<compile_context>
chip_gen: v7x
topology: tpu7x:2x2x1
jax: 0.10.0
libtpu: 0.0.40
codegen_flags: <defaults>
</compile_context>

<pallas_src>
import functools

import jax
import jax.numpy as jnp
from jax import lax
from jax.experimental import pallas as pl
from jax.experimental.pallas import tpu as pltpu


def _round_up(x, m):
    return (x + m - 1) // m * m


# ---------------------------------------------------------------------------
# Fused kernel: per grid step, project a TB-timestep slab through W_ih^T on the
# MXU (off the serial chain), then run the serial tanh recurrence, carrying h
# in VMEM scratch across grid steps and writing lane-dense (TB, B, NN) slabs.
# ---------------------------------------------------------------------------
def _rnn_kernel(x_ref, h0_ref, wih_t_ref, whh_t_ref, bias_ref, out_ref,
                h_scratch, *, tb):
    # Seed the hidden-state carry once; it persists across grid steps.
    @pl.when(pl.program_id(0) == 0)
    def _():
        h_scratch[...] = h0_ref[...]

    # Constant index_maps -> both weights are DMA'd once and stay VMEM-resident.
    whh_t = whh_t_ref[...]
    mxu_dtype = whh_t_ref.dtype

    # Fused, hoisted input projection for the whole TB slab (independent of h,
    # so the MXU slack absorbs it).  The result is staged directly in the
    # (TB, B, NN) output block -- no extra VMEM buffer, no HBM intermediate.
    xp2d = (
        jnp.dot(x_ref[...], wih_t_ref[...], preferred_element_type=jnp.float32)
        + bias_ref[...]
    )
    out_ref[...] = xp2d.reshape(out_ref.shape).astype(out_ref.dtype)

    def step(i, h):
        # MXU operands in mxu_dtype; add + tanh stay f32 on VPU/EUP (v5e-safe).
        pre = out_ref[i] + jnp.dot(
            h.astype(mxu_dtype), whh_t, preferred_element_type=jnp.float32)
        h_new = jnp.tanh(pre)
        out_ref[i] = h_new.astype(out_ref.dtype)
        return h_new

    # unroll=True: gives the scheduler the whole TB-step window to overlap the
    # slab DMAs of adjacent grid steps with the unavoidable serial h chain.
    h_scratch[...] = lax.fori_loop(0, tb, step, h_scratch[...], unroll=True)


def rnn_forward(x, h0, w_ih, w_hh, b_ih, b_hh, *, time_block=16,
                mxu_dtype=jnp.float32):
    """x: (seq, batch, n_inputs); h0: (batch, n_neurons).

    w_ih: (n_neurons, n_inputs), w_hh: (n_neurons, n_neurons),
    b_ih, b_hh: (n_neurons,)   -- PyTorch RNNCell parameter conventions.

    Returns (outputs, hx): outputs is (seq, batch, n_neurons) stacking every
    hidden state (the PyTorch module returns them as a list), hx is the final
    hidden state.
    """
    seq, batch, n_inputs = x.shape
    n_neurons = h0.shape[1]
    f32 = jnp.float32

    # Hardware-friendly padded sizes: 8-sublane batch / input, 128-lane hidden.
    B = _round_up(batch, 8)
    NI = _round_up(n_inputs, 8)          # NOT 128: keeps the x read small.
    NN = _round_up(n_neurons, 128)
    TB = time_block
    S = _round_up(seq, TB)

    # Zero padding is exact: padded W / bias columns are zero, so padded h
    # columns stay exactly 0 through the recurrence; padded batch rows and
    # trailing timesteps are computed but sliced off before returning.
    x_p = jnp.zeros((S, B, NI), f32).at[:seq, :batch, :n_inputs].set(
        x.astype(f32))
    x2d = x_p.reshape(S * B, NI).astype(mxu_dtype)
    h0_p = jnp.zeros((B, NN), f32).at[:batch, :n_neurons].set(h0.astype(f32))
    wih_t_p = jnp.zeros((NI, NN), f32).at[:n_inputs, :n_neurons].set(
        jnp.asarray(w_ih, f32).T).astype(mxu_dtype)
    whh_t_p = jnp.zeros((NN, NN), f32).at[:n_neurons, :n_neurons].set(
        jnp.asarray(w_hh, f32).T).astype(mxu_dtype)
    bias_p = jnp.zeros((1, NN), f32).at[0, :n_neurons].set(
        jnp.asarray(b_ih, f32) + jnp.asarray(b_hh, f32))

    out_p = pl.pallas_call(
        functools.partial(_rnn_kernel, tb=TB),
        out_shape=jax.ShapeDtypeStruct((S, B, NN), f32),
        grid_spec=pltpu.PrefetchScalarGridSpec(
            num_scalar_prefetch=0,
            grid=(S // TB,),
            in_specs=[
                pl.BlockSpec((TB * B, NI), lambda t: (t, 0)),   # x slab rows
                pl.BlockSpec((B, NN), lambda t: (0, 0)),        # h0 (resident)
                pl.BlockSpec((NI, NN), lambda t: (0, 0)),       # W_ih^T (resident)
                pl.BlockSpec((NN, NN), lambda t: (0, 0)),       # W_hh^T (resident)
                pl.BlockSpec((1, NN), lambda t: (0, 0)),        # summed bias (f32)
            ],
            out_specs=pl.BlockSpec((TB, B, NN), lambda t: (t, 0, 0)),
            scratch_shapes=[pltpu.VMEM((B, NN), f32)],
        ),
        compiler_params=pltpu.CompilerParams(
            dimension_semantics=("arbitrary",),      # true time recurrence
            vmem_limit_bytes=32 * 1024 * 1024,       # v5e default is only 16 MiB
        ),
    )(x2d, h0_p, wih_t_p, whh_t_p, bias_p)

    outputs = out_p[:seq, :batch, :n_neurons]
    return outputs, outputs[-1]


def _reference(x, h0, w_ih, w_hh, b_ih, b_hh):
    """Pure-JAX reference mirroring torch.nn.RNNCell (tanh) semantics."""
    h = h0
    outs = []
    for t in range(x.shape[0]):
        h = jnp.tanh(x[t] @ w_ih.T + b_ih + h @ w_hh.T + b_hh)
        outs.append(h)
    return jnp.stack(outs), h


if __name__ == "__main__":
    batch_size, n_inputs, n_neurons, seq_len = 4, 3, 5, 40

    key = jax.random.PRNGKey(0)
    k_x, k_h, k_wih, k_whh, k_bih, k_bhh = jax.random.split(key, 6)

    bound = 1.0 / (n_neurons ** 0.5)
    x = jax.random.normal(k_x, (seq_len, batch_size, n_inputs), jnp.float32)
    h0 = jax.random.normal(k_h, (batch_size, n_neurons), jnp.float32)  # self.hx
    w_ih = jax.random.uniform(k_wih, (n_neurons, n_inputs), jnp.float32, -bound, bound)
    w_hh = jax.random.uniform(k_whh, (n_neurons, n_neurons), jnp.float32, -bound, bound)
    b_ih = jax.random.uniform(k_bih, (n_neurons,), jnp.float32, -bound, bound)
    b_hh = jax.random.uniform(k_bhh, (n_neurons,), jnp.float32, -bound, bound)

    ref_outputs, ref_hx = _reference(x, h0, w_ih, w_hh, b_ih, b_hh)

    # f32 path: exact vs the f32 reference (seq=40, TB=16 -> 3 grid steps, so
    # the cross-grid-step h carry and the padded tail are actually exercised).
    outputs, hx = rnn_forward(x, h0, w_ih, w_hh, b_ih, b_hh)
    jax.block_until_ready((outputs, hx))
    assert outputs.shape == (seq_len, batch_size, n_neurons)
    assert jnp.allclose(outputs, ref_outputs, atol=1e-5, rtol=1e-5)
    assert jnp.allclose(hx, ref_hx, atol=1e-5, rtol=1e-5)

    # bf16-MXU-operand path (v6e/v7x weight-residency / DMA optimization):
    # accumulation, adds and tanh stay f32, so only bf16 rounding of the
    # additive terms enters -> loose tolerance.
    outputs_bf, hx_bf = rnn_forward(x, h0, w_ih, w_hh, b_ih, b_hh,
                                    mxu_dtype=jnp.bfloat16)
    jax.block_until_ready((outputs_bf, hx_bf))
    assert jnp.allclose(outputs_bf, ref_outputs, atol=1e-1, rtol=1e-1)

    print("KERNEL_OK")
</pallas_src>

<mosaic_0001>
module attributes {stable_mosaic.version = 11 : i64} {
  func.func @_rnn_kernel(%arg0: i32, %arg1: memref<128x8xf32, #tpu.memory_space<vmem>>, %arg2: memref<8x128xf32, #tpu.memory_space<vmem>>, %arg3: memref<8x128xf32, #tpu.memory_space<vmem>>, %arg4: memref<128x128xf32, #tpu.memory_space<vmem>>, %arg5: memref<1x128xf32, #tpu.memory_space<vmem>>, %arg6: memref<16x8x128xf32, #tpu.memory_space<vmem>>, %arg7: memref<8x128xf32, #tpu.memory_space<vmem>>) attributes {dimension_semantics = [#tpu.dimension_semantics<arbitrary>], iteration_bounds = array<i64: 3>, scalar_prefetch = 0 : i64, scratch_operands = 1 : i64, tpu.core_type = #tpu.core_type<tc>, window_params = [{transform_indices = @transform_0, window_bounds = array<i64: 128, 8>}, {pipeline_mode = #tpu.pipeline_mode<synchronous>, transform_indices = @transform_1, window_bounds = array<i64: 8, 128>}, {pipeline_mode = #tpu.pipeline_mode<synchronous>, transform_indices = @transform_2, window_bounds = array<i64: 8, 128>}, {pipeline_mode = #tpu.pipeline_mode<synchronous>, transform_indices = @transform_3, window_bounds = array<i64: 128, 128>}, {pipeline_mode = #tpu.pipeline_mode<synchronous>, transform_indices = @transform_4, window_bounds = array<i64: 1, 128>}, {transform_indices = @transform_5, window_bounds = array<i64: 16, 8, 128>}]} {
    %c0_i32 = arith.constant 0 : i32
    %0 = arith.cmpi eq, %arg0, %c0_i32 : i32
    %1 = arith.extui %0 : i1 to i32
    %c0_i32_0 = arith.constant 0 : i32
    %2 = arith.cmpi ne, %1, %c0_i32_0 : i32
    scf.if %2 {
      %c0_96 = arith.constant 0 : index
      %c0_97 = arith.constant 0 : index
      %174 = vector.load %arg2[%c0_96, %c0_97] : memref<8x128xf32, #tpu.memory_space<vmem>>, vector<8x128xf32>
      %c0_98 = arith.constant 0 : index
      %c0_99 = arith.constant 0 : index
      %175 = vector.load %arg7[%c0_98, %c0_99] : memref<8x128xf32, #tpu.memory_space<vmem>>, vector<8x128xf32>
      tpu.vector_store %arg7[%c0_98, %c0_99], %174 {strides = array<i32>} : memref<8x128xf32, #tpu.memory_space<vmem>>, vector<8x128xf32>,
    } else {
    }
    %c0 = arith.constant 0 : index
    %c0_1 = arith.constant 0 : index
    %3 = vector.load %arg4[%c0, %c0_1] : memref<128x128xf32, #tpu.memory_space<vmem>>, vector<128x128xf32>
    %c0_2 = arith.constant 0 : index
    %c0_3 = arith.constant 0 : index
    %4 = vector.load %arg1[%c0_2, %c0_3] : memref<128x8xf32, #tpu.memory_space<vmem>>, vector<128x8xf32>
    %c0_4 = arith.constant 0 : index
    %c0_5 = arith.constant 0 : index
    %5 = vector.load %arg3[%c0_4, %c0_5] : memref<8x128xf32, #tpu.memory_space<vmem>>, vector<8x128xf32>
    %cst = arith.constant dense<0.000000e+00> : vector<128x128xf32>
    %6 = tpu.matmul %4, %5, %cst {dimension_numbers = #tpu.dot_dimension_numbers<[1], [0], [0], [1], [0, 0, 1, 1], [], []>} : vector<128x8xf32>, vector<8x128xf32>, vector<128x128xf32> -> vector<128x128xf32>
    %c0_6 = arith.constant 0 : index
    %c0_7 = arith.constant 0 : index
    %7 = vector.load %arg5[%c0_6, %c0_7] : memref<1x128xf32, #tpu.memory_space<vmem>>, vector<1x128xf32>
    %8 = vector.broadcast %7 : vector<1x128xf32> to vector<128x128xf32>
    %9 = arith.addf %6, %8 : vector<128x128xf32>
    %10 = vector.shape_cast %9 : vector<128x128xf32> to vector<16x8x128xf32>
    %c0_8 = arith.constant 0 : index
    %c0_9 = arith.constant 0 : index
    %c0_10 = arith.constant 0 : index
    %11 = vector.load %arg6[%c0_8, %c0_9, %c0_10] : memref<16x8x128xf32, #tpu.memory_space<vmem>>, vector<16x8x128xf32>
    tpu.vector_store %arg6[%c0_8, %c0_9, %c0_10], %10 {strides = array<i32>} : memref<16x8x128xf32, #tpu.memory_space<vmem>>, vector<16x8x128xf32>,
    %c0_11 = arith.constant 0 : index
    %c0_12 = arith.constant 0 : index
    %12 = vector.load %arg7[%c0_11, %c0_12] : memref<8x128xf32, #tpu.memory_space<vmem>>, vector<8x128xf32>
    %c0_i32_13 = arith.constant 0 : i32
    %13 = arith.index_cast %c0_i32_13 : i32 to index
    %c0_14 = arith.constant 0 : index
    %c0_15 = arith.constant 0 : index
    %14 = vector.load %arg6[%13, %c0_14, %c0_15] : memref<16x8x128xf32, #tpu.memory_space<vmem>>, vector<1x8x128xf32>
    %15 = vector.shape_cast %14 : vector<1x8x128xf32> to vector<8x128xf32>
    %cst_16 = arith.constant dense<0.000000e+00> : vector<8x128xf32>
    %16 = tpu.matmul %12, %3, %cst_16 {dimension_numbers = #tpu.dot_dimension_numbers<[1], [0], [0], [1], [0, 0, 1, 1], [], []>} : vector<8x128xf32>, vector<128x128xf32>, vector<8x128xf32> -> vector<8x128xf32>
    %17 = arith.addf %15, %16 : vector<8x128xf32>
    %18 = math.tanh %17 : vector<8x128xf32>
    %19 = arith.index_cast %c0_i32_13 : i32 to index
    %c0_17 = arith.constant 0 : index
    %c0_18 = arith.constant 0 : index
    %20 = vector.load %arg6[%19, %c0_17, %c0_18] : memref<16x8x128xf32, #tpu.memory_space<vmem>>, vector<1x8x128xf32>
    %21 = vector.shape_cast %20 : vector<1x8x128xf32> to vector<8x128xf32>
    %22 = vector.shape_cast %18 : vector<8x128xf32> to vector<1x8x128xf32>
    tpu.vector_store %arg6[%19, %c0_17, %c0_18], %22 {strides = array<i32>} : memref<16x8x128xf32, #tpu.memory_space<vmem>>, vector<1x8x128xf32>,
    %c1_i32 = arith.constant 1 : i32
    %23 = arith.index_cast %c1_i32 : i32 to index
    %c0_19 = arith.constant 0 : index
    %c0_20 = arith.constant 0 : index
    %24 = vector.load %arg6[%23, %c0_19, %c0_20] : memref<16x8x128xf32, #tpu.memory_space<vmem>>, vector<1x8x128xf32>
    %25 = vector.shape_cast %24 : vector<1x8x128xf32> to vector<8x128xf32>
    %cst_21 = arith.constant dense<0.000000e+00> : vector<8x128xf32>
    %26 = tpu.matmul %18, %3, %cst_21 {dimension_numbers = #tpu.dot_dimension_numbers<[1], [0], [0], [1], [0, 0, 1, 1], [], []>} : vector<8x128xf32>, vector<128x128xf32>, vector<8x128xf32> -> vector<8x128xf32>
    %27 = arith.addf %25, %26 : vector<8x128xf32>
    %28 = math.tanh %27 : vector<8x128xf32>
    %29 = arith.index_cast %c1_i32 : i32 to index
    %c0_22 = arith.constant 0 : index
    %c0_23 = arith.constant 0 : index
    %30 = vector.load %arg6[%29, %c0_22, %c0_23] : memref<16x8x128xf32, #tpu.memory_space<vmem>>, vector<1x8x128xf32>
    %31 = vector.shape_cast %30 : vector<1x8x128xf32> to vector<8x128xf32>
    %32 = vector.shape_cast %28 : vector<8x128xf32> to vector<1x8x128xf32>
    tpu.vector_store %arg6[%29, %c0_22, %c0_23], %32 {strides = array<i32>} : memref<16x8x128xf32, #tpu.memory_space<vmem>>, vector<1x8x128xf32>,
    %c2_i32 = arith.constant 2 : i32
    %33 = arith.index_cast %c2_i32 : i32 to index
    %c0_24 = arith.constant 0 : index
    %c0_25 = arith.constant 0 : index
    %34 = vector.load %arg6[%33, %c0_24, %c0_25] : memref<16x8x128xf32, #tpu.memory_space<vmem>>, vector<1x8x128xf32>
    %35 = vector.shape_cast %34 : vector<1x8x128xf32> to vector<8x128xf32>
    %cst_26 = arith.constant dense<0.000000e+00> : vector<8x128xf32>
    %36 = tpu.matmul %28, %3, %cst_26 {dimension_numbers = #tpu.dot_dimension_numbers<[1], [0], [0], [1], [0, 0, 1, 1], [], []>} : vector<8x128xf32>, vector<128x128xf32>, vector<8x128xf32> -> vector<8x128xf32>
    %37 = arith.addf %35, %36 : vector<8x128xf32>
    %38 = math.tanh %37 : vector<8x128xf32>
    %39 = arith.index_cast %c2_i32 : i32 to index
    %c0_27 = arith.constant 0 : index
    %c0_28 = arith.constant 0 : index
    %40 = vector.load %arg6[%39, %c0_27, %c0_28] : memref<16x8x128xf32, #tpu.memory_space<vmem>>, vector<1x8x128xf32>
    %41 = vector.shape_cast %40 : vector<1x8x128xf32> to vector<8x128xf32>
    %42 = vector.shape_cast %38 : vector<8x128xf32> to vector<1x8x128xf32>
    tpu.vector_store %arg6[%39, %c0_27, %c0_28], %42 {strides = array<i32>} : memref<16x8x128xf32, #tpu.memory_space<vmem>>, vector<1x8x128xf32>,
    %c3_i32 = arith.constant 3 : i32
    %43 = arith.index_cast %c3_i32 : i32 to index
    %c0_29 = arith.constant 0 : index
    %c0_30 = arith.constant 0 : index
    %44 = vector.load %arg6[%43, %c0_29, %c0_30] : memref<16x8x128xf32, #tpu.memory_space<vmem>>, vector<1x8x128xf32>
    %45 = vector.shape_cast %44 : vector<1x8x128xf32> to vector<8x128xf32>
    %cst_31 = arith.constant dense<0.000000e+00> : vector<8x128xf32>
    %46 = tpu.matmul %38, %3, %cst_31 {dimension_numbers = #tpu.dot_dimension_numbers<[1], [0], [0], [1], [0, 0, 1, 1], [], []>} : vector<8x128xf32>, vector<128x128xf32>, vector<8x128xf32> -> vector<8x128xf32>
    %47 = arith.addf %45, %46 : vector<8x128xf32>
    %48 = math.tanh %47 : vector<8x128xf32>
    %49 = arith.index_cast %c3_i32 : i32 to index
    %c0_32 = arith.constant 0 : index
    %c0_33 = arith.constant 0 : index
    %50 = vector.load %arg6[%49, %c0_32, %c0_33] : memref<16x8x128xf32, #tpu.memory_space<vmem>>, vector<1x8x128xf32>
    %51 = vector.shape_cast %50 : vector<1x8x128xf32> to vector<8x128xf32>
    %52 = vector.shape_cast %48 : vector<8x128xf32> to vector<1x8x128xf32>
    tpu.vector_store %arg6[%49, %c0_32, %c0_33], %52 {strides = array<i32>} : memref<16x8x128xf32, #tpu.memory_space<vmem>>, vector<1x8x128xf32>,
    %c4_i32 = arith.constant 4 : i32
    %53 = arith.index_cast %c4_i32 : i32 to index
    %c0_34 = arith.constant 0 : index
    %c0_35 = arith.constant 0 : index
    %54 = vector.load %arg6[%53, %c0_34, %c0_35] : memref<16x8x128xf32, #tpu.memory_space<vmem>>, vector<1x8x128xf32>
    %55 = vector.shape_cast %54 : vector<1x8x128xf32> to vector<8x128xf32>
    %cst_36 = arith.constant dense<0.000000e+00> : vector<8x128xf32>
    %56 = tpu.matmul %48, %3, %cst_36 {dimension_numbers = #tpu.dot_dimension_numbers<[1], [0], [0], [1], [0, 0, 1, 1], [], []>} : vector<8x128xf32>, vector<128x128xf32>, vector<8x128xf32> -> vector<8x128xf32>
    %57 = arith.addf %55, %56 : vector<8x128xf32>
    %58 = math.tanh %57 : vector<8x128xf32>
    %59 = arith.index_cast %c4_i32 : i32 to index
    %c0_37 = arith.constant 0 : index
    %c0_38 = arith.constant 0 : index
    %60 = vector.load %arg6[%59, %c0_37, %c0_38] : memref<16x8x128xf32, #tpu.memory_space<vmem>>, vector<1x8x128xf32>
    %61 = vector.shape_cast %60 : vector<1x8x128xf32> to vector<8x128xf32>
    %62 = vector.shape_cast %58 : vector<8x128xf32> to vector<1x8x128xf32>
    tpu.vector_store %arg6[%59, %c0_37, %c0_38], %62 {strides = array<i32>} : memref<16x8x128xf32, #tpu.memory_space<vmem>>, vector<1x8x128xf32>,
    %c5_i32 = arith.constant 5 : i32
    %63 = arith.index_cast %c5_i32 : i32 to index
    %c0_39 = arith.constant 0 : index
    %c0_40 = arith.constant 0 : index
    %64 = vector.load %arg6[%63, %c0_39, %c0_40] : memref<16x8x128xf32, #tpu.memory_space<vmem>>, vector<1x8x128xf32>
    %65 = vector.shape_cast %64 : vector<1x8x128xf32> to vector<8x128xf32>
    %cst_41 = arith.constant dense<0.000000e+00> : vector<8x128xf32>
    %66 = tpu.matmul %58, %3, %cst_41 {dimension_numbers = #tpu.dot_dimension_numbers<[1], [0], [0], [1], [0, 0, 1, 1], [], []>} : vector<8x128xf32>, vector<128x128xf32>, vector<8x128xf32> -> vector<8x128xf32>
    %67 = arith.addf %65, %66 : vector<8x128xf32>
    %68 = math.tanh %67 : vector<8x128xf32>
    %69 = arith.index_cast %c5_i32 : i32 to index
    %c0_42 = arith.constant 0 : index
    %c0_43 = arith.constant 0 : index
    %70 = vector.load %arg6[%69, %c0_42, %c0_43] : memref<16x8x128xf32, #tpu.memory_space<vmem>>, vector<1x8x128xf32>
    %71 = vector.shape_cast %70 : vector<1x8x128xf32> to vector<8x128xf32>
    %72 = vector.shape_cast %68 : vector<8x128xf32> to vector<1x8x128xf32>
    tpu.vector_store %arg6[%69, %c0_42, %c0_43], %72 {strides = array<i32>} : memref<16x8x128xf32, #tpu.memory_space<vmem>>, vector<1x8x128xf32>,
    %c6_i32 = arith.constant 6 : i32
    %73 = arith.index_cast %c6_i32 : i32 to index
    %c0_44 = arith.constant 0 : index
    %c0_45 = arith.constant 0 : index
    %74 = vector.load %arg6[%73, %c0_44, %c0_45] : memref<16x8x128xf32, #tpu.memory_space<vmem>>, vector<1x8x128xf32>
    %75 = vector.shape_cast %74 : vector<1x8x128xf32> to vector<8x128xf32>
    %cst_46 = arith.constant dense<0.000000e+00> : vector<8x128xf32>
    %76 = tpu.matmul %68, %3, %cst_46 {dimension_numbers = #tpu.dot_dimension_numbers<[1], [0], [0], [1], [0, 0, 1, 1], [], []>} : vector<8x128xf32>, vector<128x128xf32>, vector<8x128xf32> -> vector<8x128xf32>
    %77 = arith.addf %75, %76 : vector<8x128xf32>
    %78 = math.tanh %77 : vector<8x128xf32>
    %79 = arith.index_cast %c6_i32 : i32 to index
    %c0_47 = arith.constant 0 : index
    %c0_48 = arith.constant 0 : index
    %80 = vector.load %arg6[%79, %c0_47, %c0_48] : memref<16x8x128xf32, #tpu.memory_space<vmem>>, vector<1x8x128xf32>
    %81 = vector.shape_cast %80 : vector<1x8x128xf32> to vector<8x128xf32>
    %82 = vector.shape_cast %78 : vector<8x128xf32> to vector<1x8x128xf32>
    tpu.vector_store %arg6[%79, %c0_47, %c0_48], %82 {strides = array<i32>} : memref<16x8x128xf32, #tpu.memory_space<vmem>>, vector<1x8x128xf32>,
    %c7_i32 = arith.constant 7 : i32
    %83 = arith.index_cast %c7_i32 : i32 to index
    %c0_49 = arith.constant 0 : index
    %c0_50 = arith.constant 0 : index
    %84 = vector.load %arg6[%83, %c0_49, %c0_50] : memref<16x8x128xf32, #tpu.memory_space<vmem>>, vector<1x8x128xf32>
    %85 = vector.shape_cast %84 : vector<1x8x128xf32> to vector<8x128xf32>
    %cst_51 = arith.constant dense<0.000000e+00> : vector<8x128xf32>
    %86 = tpu.matmul %78, %3, %cst_51 {dimension_numbers = #tpu.dot_dimension_numbers<[1], [0], [0], [1], [0, 0, 1, 1], [], []>} : vector<8x128xf32>, vector<128x128xf32>, vector<8x128xf32> -> vector<8x128xf32>
    %87 = arith.addf %85, %86 : vector<8x128xf32>
    %88 = math.tanh %87 : vector<8x128xf32>
    %89 = arith.index_cast %c7_i32 : i32 to index
    %c0_52 = arith.constant 0 : index
    %c0_53 = arith.constant 0 : index
    %90 = vector.load %arg6[%89, %c0_52, %c0_53] : memref<16x8x128xf32, #tpu.memory_space<vmem>>, vector<1x8x128xf32>
    %91 = vector.shape_cast %90 : vector<1x8x128xf32> to vector<8x128xf32>
    %92 = vector.shape_cast %88 : vector<8x128xf32> to vector<1x8x128xf32>
    tpu.vector_store %arg6[%89, %c0_52, %c0_53], %92 {strides = array<i32>} : memref<16x8x128xf32, #tpu.memory_space<vmem>>, vector<1x8x128xf32>,
    %c8_i32 = arith.constant 8 : i32
    %93 = arith.index_cast %c8_i32 : i32 to index
    %c0_54 = arith.constant 0 : index
    %c0_55 = arith.constant 0 : index
    %94 = vector.load %arg6[%93, %c0_54, %c0_55] : memref<16x8x128xf32, #tpu.memory_space<vmem>>, vector<1x8x128xf32>
    %95 = vector.shape_cast %94 : vector<1x8x128xf32> to vector<8x128xf32>
    %cst_56 = arith.constant dense<0.000000e+00> : vector<8x128xf32>
    %96 = tpu.matmul %88, %3, %cst_56 {dimension_numbers = #tpu.dot_dimension_numbers<[1], [0], [0], [1], [0, 0, 1, 1], [], []>} : vector<8x128xf32>, vector<128x128xf32>, vector<8x128xf32> -> vector<8x128xf32>
    %97 = arith.addf %95, %96 : vector<8x128xf32>
    %98 = math.tanh %97 : vector<8x128xf32>
    %99 = arith.index_cast %c8_i32 : i32 to index
    %c0_57 = arith.constant 0 : index
    %c0_58 = arith.constant 0 : index
    %100 = vector.load %arg6[%99, %c0_57, %c0_58] : memref<16x8x128xf32, #tpu.memory_space<vmem>>, vector<1x8x128xf32>
    %101 = vector.shape_cast %100 : vector<1x8x128xf32> to vector<8x128xf32>
    %102 = vector.shape_cast %98 : vector<8x128xf32> to vector<1x8x128xf32>
    tpu.vector_store %arg6[%99, %c0_57, %c0_58], %102 {strides = array<i32>} : memref<16x8x128xf32, #tpu.memory_space<vmem>>, vector<1x8x128xf32>,
    %c9_i32 = arith.constant 9 : i32
    %103 = arith.index_cast %c9_i32 : i32 to index
    %c0_59 = arith.constant 0 : index
    %c0_60 = arith.constant 0 : index
    %104 = vector.load %arg6[%103, %c0_59, %c0_60] : memref<16x8x128xf32, #tpu.memory_space<vmem>>, vector<1x8x128xf32>
    %105 = vector.shape_cast %104 : vector<1x8x128xf32> to vector<8x128xf32>
    %cst_61 = arith.constant dense<0.000000e+00> : vector<8x128xf32>
    %106 = tpu.matmul %98, %3, %cst_61 {dimension_numbers = #tpu.dot_dimension_numbers<[1], [0], [0], [1], [0, 0, 1, 1], [], []>} : vector<8x128xf32>, vector<128x128xf32>, vector<8x128xf32> -> vector<8x128xf32>
    %107 = arith.addf %105, %106 : vector<8x128xf32>
    %108 = math.tanh %107 : vector<8x128xf32>
    %109 = arith.index_cast %c9_i32 : i32 to index
    %c0_62 = arith.constant 0 : index
    %c0_63 = arith.constant 0 : index
    %110 = vector.load %arg6[%109, %c0_62, %c0_63] : memref<16x8x128xf32, #tpu.memory_space<vmem>>, vector<1x8x128xf32>
    %111 = vector.shape_cast %110 : vector<1x8x128xf32> to vector<8x128xf32>
    %112 = vector.shape_cast %108 : vector<8x128xf32> to vector<1x8x128xf32>
    tpu.vector_store %arg6[%109, %c0_62, %c0_63], %112 {strides = array<i32>} : memref<16x8x128xf32, #tpu.memory_space<vmem>>, vector<1x8x128xf32>,
    %c10_i32 = arith.constant 10 : i32
    %113 = arith.index_cast %c10_i32 : i32 to index
    %c0_64 = arith.constant 0 : index
    %c0_65 = arith.constant 0 : index
    %114 = vector.load %arg6[%113, %c0_64, %c0_65] : memref<16x8x128xf32, #tpu.memory_space<vmem>>, vector<1x8x128xf32>
    %115 = vector.shape_cast %114 : vector<1x8x128xf32> to vector<8x128xf32>
    %cst_66 = arith.constant dense<0.000000e+00> : vector<8x128xf32>
    %116 = tpu.matmul %108, %3, %cst_66 {dimension_numbers = #tpu.dot_dimension_numbers<[1], [0], [0], [1], [0, 0, 1, 1], [], []>} : vector<8x128xf32>, vector<128x128xf32>, vector<8x128xf32> -> vector<8x128xf32>
    %117 = arith.addf %115, %116 : vector<8x128xf32>
    %118 = math.tanh %117 : vector<8x128xf32>
    %119 = arith.index_cast %c10_i32 : i32 to index
    %c0_67 = arith.constant 0 : index
    %c0_68 = arith.constant 0 : index
    %120 = vector.load %arg6[%119, %c0_67, %c0_68] : memref<16x8x128xf32, #tpu.memory_space<vmem>>, vector<1x8x128xf32>
    %121 = vector.shape_cast %120 : vector<1x8x128xf32> to vector<8x128xf32>
    %122 = vector.shape_cast %118 : vector<8x128xf32> to vector<1x8x128xf32>
    tpu.vector_store %arg6[%119, %c0_67, %c0_68], %122 {strides = array<i32>} : memref<16x8x128xf32, #tpu.memory_space<vmem>>, vector<1x8x128xf32>,
    %c11_i32 = arith.constant 11 : i32
    %123 = arith.index_cast %c11_i32 : i32 to index
    %c0_69 = arith.constant 0 : index
    %c0_70 = arith.constant 0 : index
    %124 = vector.load %arg6[%123, %c0_69, %c0_70] : memref<16x8x128xf32, #tpu.memory_space<vmem>>, vector<1x8x128xf32>
    %125 = vector.shape_cast %124 : vector<1x8x128xf32> to vector<8x128xf32>
    %cst_71 = arith.constant dense<0.000000e+00> : vector<8x128xf32>
    %126 = tpu.matmul %118, %3, %cst_71 {dimension_numbers = #tpu.dot_dimension_numbers<[1], [0], [0], [1], [0, 0, 1, 1], [], []>} : vector<8x128xf32>, vector<128x128xf32>, vector<8x128xf32> -> vector<8x128xf32>
    %127 = arith.addf %125, %126 : vector<8x128xf32>
    %128 = math.tanh %127 : vector<8x128xf32>
    %129 = arith.index_cast %c11_i32 : i32 to index
    %c0_72 = arith.constant 0 : index
    %c0_73 = arith.constant 0 : index
    %130 = vector.load %arg6[%129, %c0_72, %c0_73] : memref<16x8x128xf32, #tpu.memory_space<vmem>>, vector<1x8x128xf32>
    %131 = vector.shape_cast %130 : vector<1x8x128xf32> to vector<8x128xf32>
    %132 = vector.shape_cast %128 : vector<8x128xf32> to vector<1x8x128xf32>
    tpu.vector_store %arg6[%129, %c0_72, %c0_73], %132 {strides = array<i32>} : memref<16x8x128xf32, #tpu.memory_space<vmem>>, vector<1x8x128xf32>,
    %c12_i32 = arith.constant 12 : i32
    %133 = arith.index_cast %c12_i32 : i32 to index
    %c0_74 = arith.constant 0 : index
    %c0_75 = arith.constant 0 : index
    %134 = vector.load %arg6[%133, %c0_74, %c0_75] : memref<16x8x128xf32, #tpu.memory_space<vmem>>, vector<1x8x128xf32>
    %135 = vector.shape_cast %134 : vector<1x8x128xf32> to vector<8x128xf32>
    %cst_76 = arith.constant dense<0.000000e+00> : vector<8x128xf32>
    %136 = tpu.matmul %128, %3, %cst_76 {dimension_numbers = #tpu.dot_dimension_numbers<[1], [0], [0], [1], [0, 0, 1, 1], [], []>} : vector<8x128xf32>, vector<128x128xf32>, vector<8x128xf32> -> vector<8x128xf32>
    %137 = arith.addf %135, %136 : vector<8x128xf32>
    %138 = math.tanh %137 : vector<8x128xf32>
    %139 = arith.index_cast %c12_i32 : i32 to index
    %c0_77 = arith.constant 0 : index
    %c0_78 = arith.constant 0 : index
    %140 = vector.load %arg6[%139, %c0_77, %c0_78] : memref<16x8x128xf32, #tpu.memory_space<vmem>>, vector<1x8x128xf32>
    %141 = vector.shape_cast %140 : vector<1x8x128xf32> to vector<8x128xf32>
    %142 = vector.shape_cast %138 : vector<8x128xf32> to vector<1x8x128xf32>
    tpu.vector_store %arg6[%139, %c0_77, %c0_78], %142 {strides = array<i32>} : memref<16x8x128xf32, #tpu.memory_space<vmem>>, vector<1x8x128xf32>,
    %c13_i32 = arith.constant 13 : i32
    %143 = arith.index_cast %c13_i32 : i32 to index
    %c0_79 = arith.constant 0 : index
    %c0_80 = arith.constant 0 : index
    %144 = vector.load %arg6[%143, %c0_79, %c0_80] : memref<16x8x128xf32, #tpu.memory_space<vmem>>, vector<1x8x128xf32>
    %145 = vector.shape_cast %144 : vector<1x8x128xf32> to vector<8x128xf32>
    %cst_81 = arith.constant dense<0.000000e+00> : vector<8x128xf32>
    %146 = tpu.matmul %138, %3, %cst_81 {dimension_numbers = #tpu.dot_dimension_numbers<[1], [0], [0], [1], [0, 0, 1, 1], [], []>} : vector<8x128xf32>, vector<128x128xf32>, vector<8x128xf32> -> vector<8x128xf32>
    %147 = arith.addf %145, %146 : vector<8x128xf32>
    %148 = math.tanh %147 : vector<8x128xf32>
    %149 = arith.index_cast %c13_i32 : i32 to index
    %c0_82 = arith.constant 0 : index
    %c0_83 = arith.constant 0 : index
    %150 = vector.load %arg6[%149, %c0_82, %c0_83] : memref<16x8x128xf32, #tpu.memory_space<vmem>>, vector<1x8x128xf32>
    %151 = vector.shape_cast %150 : vector<1x8x128xf32> to vector<8x128xf32>
    %152 = vector.shape_cast %148 : vector<8x128xf32> to vector<1x8x128xf32>
    tpu.vector_store %arg6[%149, %c0_82, %c0_83], %152 {strides = array<i32>} : memref<16x8x128xf32, #tpu.memory_space<vmem>>, vector<1x8x128xf32>,
    %c14_i32 = arith.constant 14 : i32
    %153 = arith.index_cast %c14_i32 : i32 to index
    %c0_84 = arith.constant 0 : index
    %c0_85 = arith.constant 0 : index
    %154 = vector.load %arg6[%153, %c0_84, %c0_85] : memref<16x8x128xf32, #tpu.memory_space<vmem>>, vector<1x8x128xf32>
    %155 = vector.shape_cast %154 : vector<1x8x128xf32> to vector<8x128xf32>
    %cst_86 = arith.constant dense<0.000000e+00> : vector<8x128xf32>
    %156 = tpu.matmul %148, %3, %cst_86 {dimension_numbers = #tpu.dot_dimension_numbers<[1], [0], [0], [1], [0, 0, 1, 1], [], []>} : vector<8x128xf32>, vector<128x128xf32>, vector<8x128xf32> -> vector<8x128xf32>
    %157 = arith.addf %155, %156 : vector<8x128xf32>
    %158 = math.tanh %157 : vector<8x128xf32>
    %159 = arith.index_cast %c14_i32 : i32 to index
    %c0_87 = arith.constant 0 : index
    %c0_88 = arith.constant 0 : index
    %160 = vector.load %arg6[%159, %c0_87, %c0_88] : memref<16x8x128xf32, #tpu.memory_space<vmem>>, vector<1x8x128xf32>
    %161 = vector.shape_cast %160 : vector<1x8x128xf32> to vector<8x128xf32>
    %162 = vector.shape_cast %158 : vector<8x128xf32> to vector<1x8x128xf32>
    tpu.vector_store %arg6[%159, %c0_87, %c0_88], %162 {strides = array<i32>} : memref<16x8x128xf32, #tpu.memory_space<vmem>>, vector<1x8x128xf32>,
    %c15_i32 = arith.constant 15 : i32
    %163 = arith.index_cast %c15_i32 : i32 to index
    %c0_89 = arith.constant 0 : index
    %c0_90 = arith.constant 0 : index
    %164 = vector.load %arg6[%163, %c0_89, %c0_90] : memref<16x8x128xf32, #tpu.memory_space<vmem>>, vector<1x8x128xf32>
    %165 = vector.shape_cast %164 : vector<1x8x128xf32> to vector<8x128xf32>
    %cst_91 = arith.constant dense<0.000000e+00> : vector<8x128xf32>
    %166 = tpu.matmul %158, %3, %cst_91 {dimension_numbers = #tpu.dot_dimension_numbers<[1], [0], [0], [1], [0, 0, 1, 1], [], []>} : vector<8x128xf32>, vector<128x128xf32>, vector<8x128xf32> -> vector<8x128xf32>
    %167 = arith.addf %165, %166 : vector<8x128xf32>
    %168 = math.tanh %167 : vector<8x128xf32>
    %169 = arith.index_cast %c15_i32 : i32 to index
    %c0_92 = arith.constant 0 : index
    %c0_93 = arith.constant 0 : index
    %170 = vector.load %arg6[%169, %c0_92, %c0_93] : memref<16x8x128xf32, #tpu.memory_space<vmem>>, vector<1x8x128xf32>
    %171 = vector.shape_cast %170 : vector<1x8x128xf32> to vector<8x128xf32>
    %172 = vector.shape_cast %168 : vector<8x128xf32> to vector<1x8x128xf32>
    tpu.vector_store %arg6[%169, %c0_92, %c0_93], %172 {strides = array<i32>} : memref<16x8x128xf32, #tpu.memory_space<vmem>>, vector<1x8x128xf32>,
    %c16_i32 = arith.constant 16 : i32
    %c0_94 = arith.constant 0 : index
    %c0_95 = arith.constant 0 : index
    %173 = vector.load %arg7[%c0_94, %c0_95] : memref<8x128xf32, #tpu.memory_space<vmem>>, vector<8x128xf32>
    tpu.vector_store %arg7[%c0_94, %c0_95], %168 {strides = array<i32>} : memref<8x128xf32, #tpu.memory_space<vmem>>, vector<8x128xf32>,
    return
  }
  func.func @transform_0(%arg0: i32) -> (i32, i32) {
    %c0_i32 = arith.constant 0 : i32
    %c0_i32_0 = arith.constant 0 : i32
    return %arg0, %c0_i32 : i32, i32
  }
  func.func @transform_1(%arg0: i32) -> (i32, i32) {
    %c0_i32 = arith.constant 0 : i32
    %c0_i32_0 = arith.constant 0 : i32
    %c0_i32_1 = arith.constant 0 : i32
    return %c0_i32, %c0_i32_0 : i32, i32
  }
  func.func @transform_2(%arg0: i32) -> (i32, i32) {
    %c0_i32 = arith.constant 0 : i32
    %c0_i32_0 = arith.constant 0 : i32
    %c0_i32_1 = arith.constant 0 : i32
    return %c0_i32, %c0_i32_0 : i32, i32
  }
  func.func @transform_3(%arg0: i32) -> (i32, i32) {
    %c0_i32 = arith.constant 0 : i32
    %c0_i32_0 = arith.constant 0 : i32
    %c0_i32_1 = arith.constant 0 : i32
    return %c0_i32, %c0_i32_0 : i32, i32
  }
  func.func @transform_4(%arg0: i32) -> (i32, i32) {
    %c0_i32 = arith.constant 0 : i32
    %c0_i32_0 = arith.constant 0 : i32
    %c0_i32_1 = arith.constant 0 : i32
    return %c0_i32, %c0_i32_0 : i32, i32
  }
  func.func @transform_5(%arg0: i32) -> (i32, i32, i32) {
    %c0_i32 = arith.constant 0 : i32
    %c0_i32_0 = arith.constant 0 : i32
    %c0_i32_1 = arith.constant 0 : i32
    return %arg0, %c0_i32, %c0_i32_0 : i32, i32, i32
  }
}

</mosaic_0001>

<llo_original>
// kernel: tpu_custom_call.1
$region0: #{tpu_custom_call.1}
  #allocation0 [shape = 'u32[]', space=smem, size = 0x4, offset = 0x4, fixed_abs, tag = 'smem constant byte address 0x4 - core index']
  #allocation1 [shape = 'u32[144,128]{1,0:T(1,128)}', space=vmem, size = 0x12000, scoped, tag = 'internal scratch']
  #allocation2 [shape = 'f32[8,128]{1,0:T(8,128)}', space=vmem, size = 0x1000, scoped, tag = 'scratch operand']
  %s0 = inlined_call_operand.vmem [shape: f32[384,8], index: 0, kind: input, shape index: {}]
  %s1 = inlined_call_operand.vmem [shape: f32[8,128], index: 1, kind: input, shape index: {}]
  %s2 = inlined_call_operand.vmem [shape: f32[8,128], index: 2, kind: input, shape index: {}]
  %s3 = inlined_call_operand.vmem [shape: f32[128,128], index: 3, kind: input, shape index: {}]
  %s4 = inlined_call_operand.vmem [shape: f32[1,128], index: 4, kind: input, shape index: {}]
  %s5 = inlined_call_operand.hbm [shape: f32[48,8,128], index: 5, kind: output, shape index: {}]
  %s6 = sld [smem:[#allocation0]]
  $region57: #{tpu_custom_call.1} parent=0
    _
  %s8 = ssub.s32 1, %s6
  %s9 = scalar_select 0, %s8, %s6
  $region1: #{tpu_custom_call.1} parent=0
    #allocation3 [shape = 'u8[131072]{0}', space=vmem, size = 0x20000, scoped, tag = 'output window, operand 0']
    #allocation4 [shape = 's32[2]{0}', space=sflag, size = 0x8, scoped, tag = 'scoped memory for tpu_custom_call.1']
    %10 = vsyncpa [#allocation4], 0
    %s11 = scalar_lea.sflag [#allocation4], 1
    %12 = vsyncpa %s11, 0
    loop: start=0, step=1, limit=5
    $region2: #{tpu_custom_call.1} parent=1 // loop_pre_header
      _
    $region3: #{tpu_custom_call.1} parent=1 // loop_header
      %s14 = sphi 0, %s18
      %p15 = scmp.ge.s32.totalorder %s14, 5
      %s24 = sphi 0, %s26
      %s27 = sphi 0, %s24
      %s28 = sphi 0, %s27
      %s44 = sphi 0, %s28
      %s48 = sphi 0, %s48
      %s50 = sphi 0, %s48
      %s51 = sphi 0, %s50
      %s65 = sphi 0, %s51
      %s69 = sphi 0, %s69
      %s71 = sphi 0, %s69
      %s72 = sphi 0, %s71
      %s86 = sphi 0, %s72
      %s90 = sphi 0, %s90
      %s92 = sphi 0, %s90
      %s93 = sphi 0, %s92
      %s107 = sphi 0, %s93
      %s111 = sphi 0, %s111
      %s113 = sphi 0, %s111
      %s114 = sphi 0, %s113
      %s128 = sphi 0, %s114
      %s134 = sphi 0, %s136
      %s137 = sphi 0, %s134
      %s138 = sphi 0, %s137
      %s154 = sphi 0, %s138
    $region4: #{tpu_custom_call.1} parent=1 // loop_header_branch
      %17 = sbr.rel (%p15) target = $region8
    $region5: #{tpu_custom_call.1} parent=1 // loop_body
      %s19 = ssub.s32 %s14, 1
      %s20 = ssub.s32 %s14, 2
      %s21 = sadd.s32 %s14, 1
      %s22 = ssub.s32 %s14, %s21
      %p23 = scmp.eq.s32.totalorder %s22, 0
      %s25 = sadd.s32 %s24, 1
      %s26 = scalar_select %p23, %s24, %s25
      %p29 = pneg %p23
      %p30 = scmp.eq.s32.totalorder %s14, 2
      %p31 = por %p29, %p30
      %p32 = scmp.ne.s32.totalorder %s24, %s27
      %p33 = scmp.eq.s32.totalorder %s14, 0
      %p34 = por %p32, %p33
      %p35 = scmp.ne.s32.totalorder %s24, %s27
      %p36 = scmp.eq.s32.totalorder %s19, 2
      %p37 = por %p35, %p36
      %p38 = scmp.ne.s32.totalorder %s27, %s28
      %p39 = scmp.eq.s32.totalorder %s19, 0
      %p40 = por %p38, %p39
      %p41 = scmp.ne.s32.totalorder %s27, %s28
      %p42 = scmp.eq.s32.totalorder %s20, 2
      %p43 = por %p41, %p42
      %p45 = scmp.ne.s32.totalorder %s28, %s44
      %p46 = scmp.eq.s32.totalorder %s20, 0
      %p47 = por %p45, %p46
      %s49 = sadd.s32 %s48, 1
      %p52 = scmp.eq.s32.totalorder %s14, 2
      %p53 = scmp.ne.s32.totalorder %s48, %s50
      %p54 = scmp.eq.s32.totalorder %s14, 0
      %p55 = por %p53, %p54
      %p56 = scmp.ne.s32.totalorder %s48, %s50
      %p57 = scmp.eq.s32.totalorder %s19, 2
      %p58 = por %p56, %p57
      %p59 = scmp.ne.s32.totalorder %s50, %s51
      %p60 = scmp.eq.s32.totalorder %s19, 0
      %p61 = por %p59, %p60
      %p62 = scmp.ne.s32.totalorder %s50, %s51
      %p63 = scmp.eq.s32.totalorder %s20, 2
      %p64 = por %p62, %p63
      %p66 = scmp.ne.s32.totalorder %s51, %s65
      %p67 = scmp.eq.s32.totalorder %s20, 0
      %p68 = por %p66, %p67
      %s70 = sadd.s32 %s69, 1
      %p73 = scmp.eq.s32.totalorder %s14, 2
      %p74 = scmp.ne.s32.totalorder %s69, %s71
      %p75 = scmp.eq.s32.totalorder %s14, 0
      %p76 = por %p74, %p75
      %p77 = scmp.ne.s32.totalorder %s69, %s71
      %p78 = scmp.eq.s32.totalorder %s19, 2
      %p79 = por %p77, %p78
      %p80 = scmp.ne.s32.totalorder %s71, %s72
      %p81 = scmp.eq.s32.totalorder %s19, 0
      %p82 = por %p80, %p81
      %p83 = scmp.ne.s32.totalorder %s71, %s72
      %p84 = scmp.eq.s32.totalorder %s20, 2
      %p85 = por %p83, %p84
      %p87 = scmp.ne.s32.totalorder %s72, %s86
      %p88 = scmp.eq.s32.totalorder %s20, 0
      %p89 = por %p87, %p88
      %s91 = sadd.s32 %s90, 1
      %p94 = scmp.eq.s32.totalorder %s14, 2
      %p95 = scmp.ne.s32.totalorder %s90, %s92
      %p96 = scmp.eq.s32.totalorder %s14, 0
      %p97 = por %p95, %p96
      %p98 = scmp.ne.s32.totalorder %s90, %s92
      %p99 = scmp.eq.s32.totalorder %s19, 2
      %p100 = por %p98, %p99
      %p101 = scmp.ne.s32.totalorder %s92, %s93
      %p102 = scmp.eq.s32.totalorder %s19, 0
      %p103 = por %p101, %p102
      %p104 = scmp.ne.s32.totalorder %s92, %s93
      %p105 = scmp.eq.s32.totalorder %s20, 2
      %p106 = por %p104, %p105
      %p108 = scmp.ne.s32.totalorder %s93, %s107
      %p109 = scmp.eq.s32.totalorder %s20, 0
      %p110 = por %p108, %p109
      %s112 = sadd.s32 %s111, 1
      %p115 = scmp.eq.s32.totalorder %s14, 2
      %p116 = scmp.ne.s32.totalorder %s111, %s113
      %p117 = scmp.eq.s32.totalorder %s14, 0
      %p118 = por %p116, %p117
      %p119 = scmp.ne.s32.totalorder %s111, %s113
      %p120 = scmp.eq.s32.totalorder %s19, 2
      %p121 = por %p119, %p120
      %p122 = scmp.ne.s32.totalorder %s113, %s114
      %p123 = scmp.eq.s32.totalorder %s19, 0
      %p124 = por %p122, %p123
      %p125 = scmp.ne.s32.totalorder %s113, %s114
      %p126 = scmp.eq.s32.totalorder %s20, 2
      %p127 = por %p125, %p126
      %p129 = scmp.ne.s32.totalorder %s114, %s128
      %p130 = scmp.eq.s32.totalorder %s20, 0
      %p131 = por %p129, %p130
      %s132 = ssub.s32 %s14, %s21
      %p133 = scmp.eq.s32.totalorder %s132, 0
      %s135 = sadd.s32 %s134, 1
      %s136 = scalar_select %p133, %s134, %s135
      %p139 = pneg %p133
      %p140 = scmp.eq.s32.totalorder %s14, 2
      %p141 = por %p139, %p140
      %p142 = scmp.ne.s32.totalorder %s134, %s137
      %p143 = scmp.eq.s32.totalorder %s14, 0
      %p144 = por %p142, %p143
      %p145 = scmp.ne.s32.totalorder %s134, %s137
      %p146 = scmp.eq.s32.totalorder %s19, 2
      %p147 = por %p145, %p146
      %p148 = scmp.ne.s32.totalorder %s137, %s138
      %p149 = scmp.eq.s32.totalorder %s19, 0
      %p150 = por %p148, %p149
      %p151 = scmp.ne.s32.totalorder %s137, %s138
      %p152 = scmp.eq.s32.totalorder %s20, 2
      %p153 = por %p151, %p152
      %p155 = scmp.ne.s32.totalorder %s138, %s154
      %p156 = scmp.eq.s32.totalorder %s20, 0
      %p157 = por %p155, %p156
      %p158 = scmp.le.s32.totalorder 1, %s14
      %p159 = scmp.lt.s32.totalorder %s14, 4
      %p160 = pnand %p158, %p159
      %p161 = pneg %p160
      // Predicated region
      $region9: #{tpu_custom_call.1} parent=5 // pred_check
        _
      $region10: #{tpu_custom_call.1} parent=5 // pred_check_branch
        %163 = sbr.rel (%p160) target = $region12
      $region11: #{tpu_custom_call.1} parent=5 // pred_region
        %s164 = ssub.s32 %s14, 1
        // Predicated region
        $region13: #{tpu_custom_call.1} parent=11 // pred_check
          %p165 = pneg %p61
        $region14: #{tpu_custom_call.1} parent=11 // pred_check_branch
          %167 = sbr.rel (%p165) target = $region16
        $region15: #{tpu_custom_call.1} parent=11 // pred_region
          _
        $region16: #{tpu_custom_call.1} parent=11 // pred_fallthru
          _
        // Predicated region
        $region17: #{tpu_custom_call.1} parent=11 // pred_check
          %p168 = pneg %p82
        $region18: #{tpu_custom_call.1} parent=11 // pred_check_branch
          %170 = sbr.rel (%p168) target = $region20
        $region19: #{tpu_custom_call.1} parent=11 // pred_region
          _
        $region20: #{tpu_custom_call.1} parent=11 // pred_fallthru
          _
        // Predicated region
        $region21: #{tpu_custom_call.1} parent=11 // pred_check
          %p171 = pneg %p103
        $region22: #{tpu_custom_call.1} parent=11 // pred_check_branch
          %173 = sbr.rel (%p171) target = $region24
        $region23: #{tpu_custom_call.1} parent=11 // pred_region
          _
        $region24: #{tpu_custom_call.1} parent=11 // pred_fallthru
          _
        // Predicated region
        $region25: #{tpu_custom_call.1} parent=11 // pred_check
          %p174 = pneg %p124
        $region26: #{tpu_custom_call.1} parent=11 // pred_check_branch
          %176 = sbr.rel (%p174) target = $region28
        $region27: #{tpu_custom_call.1} parent=11 // pred_region
          _
        $region28: #{tpu_custom_call.1} parent=11 // pred_fallthru
          _
      $region12: #{tpu_custom_call.1} parent=5 // pred_fallthru
        _
      %p177 = scmp.lt.s32.totalorder %s14, 3
      // Predicated region
      $region29: #{tpu_custom_call.1} parent=5 // pred_check
        %p178 = pneg %p177
      $region30: #{tpu_custom_call.1} parent=5 // pred_check_branch
        %180 = sbr.rel (%p178) target = $region32
      $region31: #{tpu_custom_call.1} parent=5 // pred_region
        // Predicated region
        $region33: #{tpu_custom_call.1} parent=31 // pred_check
          %p181 = pneg %p34
        $region34: #{tpu_custom_call.1} parent=31 // pred_check_branch
          %183 = sbr.rel (%p181) target = $region36
        $region35: #{tpu_custom_call.1} parent=31 // pred_region
          %s184 = smul.u32 16, %s14
          %p185 = scmp.lt.s32.totalorder %s184, 47
          %s186 = scalar_select %p185, %s184, 47
          %s187 = smul.addr %s186, 8
          %s188 = scalar_lea.vmem %s0, %s187
          %s189 = smul.u32 16, %s14
        $region36: #{tpu_custom_call.1} parent=31 // pred_fallthru
          _
      $region32: #{tpu_custom_call.1} parent=5 // pred_fallthru
        _
      %p190 = scmp.le.s32.totalorder 1, %s14
      %p191 = scmp.lt.s32.totalorder %s14, 4
      %p192 = pnand %p190, %p191
      %p193 = pneg %p192
      // Predicated region
      $region37: #{tpu_custom_call.1} parent=5 // pred_check
        _
      $region38: #{tpu_custom_call.1} parent=5 // pred_check_branch
        %195 = sbr.rel (%p192) target = $region40
      $region39: #{tpu_custom_call.1} parent=5 // pred_region
        %s196 = ssub.s32 %s14, 1
        %s197 = smul.u32 16, %s19
        %p198 = scmp.lt.s32.totalorder %s197, 47
        %s199 = scalar_select %p198, %s197, 47
        %s200 = smul.addr %s199, 8
        %s201 = scalar_lea.vmem %s0, %s200
        %p202 = pneg %p40
        %p203 = pneg %p37
        %p204 = pneg %p61
        %p205 = pneg %p58
        %p206 = pneg %p82
        %p207 = pneg %p79
        %p208 = pneg %p103
        %p209 = pneg %p100
        %p210 = pneg %p124
        %p211 = pneg %p121
        %p212 = pneg %p150
        %p213 = pneg %p147
        %s214 = sand.u32 %s137, 1
        %s215 = scalar_lea.sflag [#allocation4], %s214
        %s216 = sand.u32 %s137, 1
        %s217 = smul.addr %s216, 128
        %s218 = scalar_lea.vmem [#allocation3], %s217
        %s219 = smul.u32 16, %s19
        %p220 = scmp.lt.s32.totalorder %s219, 47
        %s221 = scalar_select %p220, %s219, 47
        %s222 = smul.addr %s221, 8
        %s223 = scalar_lea.vmem %s0, %s222
        %s224 = smul.u32 16, %s19
        %s225 = smul.u32 16, %s19
        %p226 = scmp.eq.s32.totalorder %s19, 0
        // Predicated region
        $region41: #{tpu_custom_call.1} parent=39 // pred_check
          %p227 = pneg %p226
        $region42: #{tpu_custom_call.1} parent=39 // pred_check_branch
          %229 = sbr.rel (%p227) target = $region44
        $region43: #{tpu_custom_call.1} parent=39 // pred_region
          %v230 = vld [vmem:[%s1] sm:$0xff]
          %231 = vst [vmem:[#allocation2] sm:$0xff] %v230
        $region44: #{tpu_custom_call.1} parent=39 // pred_fallthru
          _
        %v232 = vld [vmem:[%s3] sm:$0xff]
        %v233 = vld [vmem:[%s3 + $0x8] sm:$0xff]
        %v234 = vld [vmem:[%s3 + $0x10] sm:$0xff]
        %v235 = vld [vmem:[%s3 + $0x18] sm:$0xff]
        %v236 = vld [vmem:[%s3 + $0x20] sm:$0xff]
        %v237 = vld [vmem:[%s3 + $0x28] sm:$0xff]
        %v238 = vld [vmem:[%s3 + $0x30] sm:$0xff]
        %v239 = vld [vmem:[%s3 + $0x38] sm:$0xff]
        %v240 = vld [vmem:[%s3 + $0x40] sm:$0xff]
        %v241 = vld [vmem:[%s3 + $0x48] sm:$0xff]
        %v242 = vld [vmem:[%s3 + $0x50] sm:$0xff]
        %v243 = vld [vmem:[%s3 + $0x58] sm:$0xff]
        %v244 = vld [vmem:[%s3 + $0x60] sm:$0xff]
        %v245 = vld [vmem:[%s3 + $0x68] sm:$0xff]
        %v246 = vld [vmem:[%s3 + $0x70] sm:$0xff]
        %v247 = vld [vmem:[%s3 + $0x78] sm:$0xff]
        %v248 = vld [vmem:[%s223] sm:$0xff]
        %v249 = vld [vmem:[%s223 + $0x8] sm:$0xff]
        %v250 = vld [vmem:[%s223 + $0x10] sm:$0xff]
        %v251 = vld [vmem:[%s223 + $0x18] sm:$0xff]
        %v252 = vld [vmem:[%s223 + $0x20] sm:$0xff]
        %v253 = vld [vmem:[%s223 + $0x28] sm:$0xff]
        %v254 = vld [vmem:[%s223 + $0x30] sm:$0xff]
        %v255 = vld [vmem:[%s223 + $0x38] sm:$0xff]
        %v256 = vld [vmem:[%s223 + $0x40] sm:$0xff]
        %v257 = vld [vmem:[%s223 + $0x48] sm:$0xff]
        %v258 = vld [vmem:[%s223 + $0x50] sm:$0xff]
        %v259 = vld [vmem:[%s223 + $0x58] sm:$0xff]
        %v260 = vld [vmem:[%s223 + $0x60] sm:$0xff]
        %v261 = vld [vmem:[%s223 + $0x68] sm:$0xff]
        %v262 = vld [vmem:[%s223 + $0x70] sm:$0xff]
        %v263 = vld [vmem:[%s223 + $0x78] sm:$0xff]
        %v264 = vld [vmem:[%s2] sm:$0xff]
        %v265 = vld [vmem:[%s4] sm:$0x1]
        %v267 = vlaneseq
        %v268 = vshrl.u32 %v267, 7
        %v269 = vsub.s32 0, %v268
        %v270 = vrot.slane %v265, %v269
        %vm272 = vcmask 64512
        %v274 = vsel %vm272, %v248, 0
        %v277 = vsel %vm272, %v249, 0
        %v280 = vsel %vm272, %v250, 0
        %v283 = vsel %vm272, %v251, 0
        %v286 = vsel %vm272, %v252, 0
        %v289 = vsel %vm272, %v253, 0
        %v292 = vsel %vm272, %v254, 0
        %v295 = vsel %vm272, %v255, 0
        %v298 = vsel %vm272, %v256, 0
        %v301 = vsel %vm272, %v257, 0
        %v304 = vsel %vm272, %v258, 0
        %v307 = vsel %vm272, %v259, 0
        %v310 = vsel %vm272, %v260, 0
        %v313 = vsel %vm272, %v261, 0
        %v316 = vsel %vm272, %v262, 0
        %v319 = vsel %vm272, %v263, 0
        %321 = vmatprep.subr.mxu0 0.0
        %322 = vmatpush1.msra.mxu0 %v264
        %323 = vmatprep.subr.mxu0 0.0
        %324 = vmatpush1.msra.mxu0 0.0
        %325 = vmatprep.subr.mxu0 0.0
        %326 = vmatpush1.msra.mxu0 0.0
        %327 = vmatprep.subr.mxu0 0.0
        %328 = vmatpush1.msra.mxu0 0.0
        %329 = vmatprep.subr.mxu0 0.0
        %330 = vmatpush1.msra.mxu0 0.0
        %331 = vmatprep.subr.mxu0 0.0
        %332 = vmatpush1.msra.mxu0 0.0
        %333 = vmatprep.subr.mxu0 0.0
        %334 = vmatpush1.msra.mxu0 0.0
        %335 = vmatprep.subr.mxu0 0.0
        %336 = vmatpush1.msra.mxu0 0.0
        %337 = vmatprep.subr.mxu0 0.0
        %338 = vmatpush1.msra.mxu0 0.0
        %339 = vmatprep.subr.mxu0 0.0
        %340 = vmatpush1.msra.mxu0 0.0
        %341 = vmatprep.subr.mxu0 0.0
        %342 = vmatpush1.msra.mxu0 0.0
        %343 = vmatprep.subr.mxu0 0.0
        %344 = vmatpush1.msra.mxu0 0.0
        %345 = vmatprep.subr.mxu0 0.0
        %346 = vmatpush1.msra.mxu0 0.0
        %347 = vmatprep.subr.mxu0 0.0
        %348 = vmatpush1.msra.mxu0 0.0
        %349 = vmatprep.subr.mxu0 0.0
        %350 = vmatpush1.msra.mxu0 0.0
        %351 = vmatprep.subr.mxu0 0.0
        %352 = vmatpush1.msra.mxu0 0.0
        %353 = vmatprep.subr.mxu0 0.0
        %354 = vmatpush1.msra.mxu0 0.0
        %355 = vmatprep.subr.mxu0 0.0
        %356 = vmatpush1.msra.mxu0 0.0
        %357 = vmatprep.subr.mxu0 0.0
        %358 = vmatpush1.msra.mxu0 0.0
        %359 = vmatprep.subr.mxu0 0.0
        %360 = vmatpush1.msra.mxu0 0.0
        %361 = vmatprep.subr.mxu0 0.0
        %362 = vmatpush1.msra.mxu0 0.0
        %363 = vmatprep.subr.mxu0 0.0
        %364 = vmatpush1.msra.mxu0 0.0
        %365 = vmatprep.subr.mxu0 0.0
        %366 = vmatpush1.msra.mxu0 0.0
        %367 = vmatprep.subr.mxu0 0.0
        %368 = vmatpush1.msra.mxu0 0.0
        %369 = vmatprep.subr.mxu0 0.0
        %370 = vmatpush1.msra.mxu0 0.0
        %371 = vmatprep.subr.mxu0 0.0
        %372 = vmatpush1.msra.mxu0 0.0
        %373 = vmatprep.subr.mxu0 0.0
        %374 = vmatpush1.msra.mxu0 0.0
        %375 = vmatprep.subr.mxu0 0.0
        %376 = vmatpush1.msra.mxu0 0.0
        %377 = vmatprep.subr.mxu0 0.0
        %378 = vmatpush1.msra.mxu0 0.0
        %379 = vmatprep.subr.mxu0 0.0
        %380 = vmatpush1.msra.mxu0 0.0
        %381 = vmatprep.subr.mxu0 0.0
        %382 = vmatpush1.msra.mxu0 0.0
        %383 = vmatprep.subr.mxu0 0.0
        %384 = vmatpush1.msra.mxu0 0.0
        %385 = vmatprep.mubr.f32.mxu0 0.0
        %386 = vmatmul.mubr.f32.gmra.mrb[0].mxu0 %v274
        %v387 = vpop.f32.mrb[0].mxu0
        %v388 = vadd.f32 %v270, %v387
        %v389 = vpop.f32.mrb[0].mxu0
        %390 = vmatprep.mubr.f32.mxu0 0.0
        %391 = vmatmul.mubr.f32.gmra.mrb[0].mxu0 %v277
        %v392 = vpop.f32.mrb[0].mxu0
        %v393 = vadd.f32 %v270, %v392
        %v394 = vpop.f32.mrb[0].mxu0
        %395 = vmatprep.mubr.f32.mxu0 0.0
        %396 = vmatmul.mubr.f32.gmra.mrb[0].mxu0 %v280
        %v397 = vpop.f32.mrb[0].mxu0
        %v398 = vadd.f32 %v270, %v397
        %v399 = vpop.f32.mrb[0].mxu0
        %400 = vmatprep.mubr.f32.mxu0 0.0
        %401 = vmatmul.mubr.f32.gmra.mrb[0].mxu0 %v283
        %v402 = vpop.f32.mrb[0].mxu0
        %v403 = vadd.f32 %v270, %v402
        %v404 = vpop.f32.mrb[0].mxu0
        %405 = vmatprep.mubr.f32.mxu0 0.0
        %406 = vmatmul.mubr.f32.gmra.mrb[0].mxu0 %v286
        %v407 = vpop.f32.mrb[0].mxu0
        %v408 = vadd.f32 %v270, %v407
        %v409 = vpop.f32.mrb[0].mxu0
        %410 = vmatprep.mubr.f32.mxu0 0.0
        %411 = vmatmul.mubr.f32.gmra.mrb[0].mxu0 %v289
        %v412 = vpop.f32.mrb[0].mxu0
        %v413 = vadd.f32 %v270, %v412
        %v414 = vpop.f32.mrb[0].mxu0
        %415 = vmatprep.mubr.f32.mxu0 0.0
        %416 = vmatmul.mubr.f32.gmra.mrb[0].mxu0 %v292
        %v417 = vpop.f32.mrb[0].mxu0
        %v418 = vadd.f32 %v270, %v417
        %v419 = vpop.f32.mrb[0].mxu0
        %420 = vmatprep.mubr.f32.mxu0 0.0
        %421 = vmatmul.mubr.f32.gmra.mrb[0].mxu0 %v295
        %v422 = vpop.f32.mrb[0].mxu0
        %v423 = vadd.f32 %v270, %v422
        %v424 = vpop.f32.mrb[0].mxu0
        %425 = vmatprep.mubr.f32.mxu0 0.0
        %426 = vmatmul.mubr.f32.gmra.mrb[0].mxu0 %v298
        %v427 = vpop.f32.mrb[0].mxu0
        %v428 = vadd.f32 %v270, %v427
        %v429 = vpop.f32.mrb[0].mxu0
        %430 = vmatprep.mubr.f32.mxu0 0.0
        %431 = vmatmul.mubr.f32.gmra.mrb[0].mxu0 %v301
        %v432 = vpop.f32.mrb[0].mxu0
        %v433 = vadd.f32 %v270, %v432
        %v434 = vpop.f32.mrb[0].mxu0
        %435 = vmatprep.mubr.f32.mxu0 0.0
        %436 = vmatmul.mubr.f32.gmra.mrb[0].mxu0 %v304
        %v437 = vpop.f32.mrb[0].mxu0
        %v438 = vadd.f32 %v270, %v437
        %v439 = vpop.f32.mrb[0].mxu0
        %440 = vmatprep.mubr.f32.mxu0 0.0
        %441 = vmatmul.mubr.f32.gmra.mrb[0].mxu0 %v307
        %v442 = vpop.f32.mrb[0].mxu0
        %v443 = vadd.f32 %v270, %v442
        %v444 = vpop.f32.mrb[0].mxu0
        %445 = vmatprep.mubr.f32.mxu0 0.0
        %446 = vmatmul.mubr.f32.gmra.mrb[0].mxu0 %v310
        %v447 = vpop.f32.mrb[0].mxu0
        %v448 = vadd.f32 %v270, %v447
        %v449 = vpop.f32.mrb[0].mxu0
        %450 = vmatprep.mubr.f32.mxu0 0.0
        %451 = vmatmul.mubr.f32.gmra.mrb[0].mxu0 %v313
        %v452 = vpop.f32.mrb[0].mxu0
        %v453 = vadd.f32 %v270, %v452
        %v454 = vpop.f32.mrb[0].mxu0
        %455 = vmatprep.mubr.f32.mxu0 0.0
        %456 = vmatmul.mubr.f32.gmra.mrb[0].mxu0 %v316
        %v457 = vpop.f32.mrb[0].mxu0
        %v458 = vadd.f32 %v270, %v457
        %v459 = vpop.f32.mrb[0].mxu0
        %460 = vmatprep.mubr.f32.mxu0 0.0
        %461 = vmatmul.mubr.f32.gmra.mrb[0].mxu0 %v319
        %v462 = vpop.f32.mrb[0].mxu0
        %v463 = vadd.f32 %v270, %v462
        %v464 = vpop.f32.mrb[0].mxu0
        %465 = vdwg.mxu0
        %466 = vst [vmem:[%s218] sm:$0xff] %v388
        %467 = vst [vmem:[%s218 + $0x8] sm:$0xff] %v393
        %468 = vst [vmem:[%s218 + $0x10] sm:$0xff] %v398
        %469 = vst [vmem:[%s218 + $0x18] sm:$0xff] %v403
        %470 = vst [vmem:[%s218 + $0x20] sm:$0xff] %v408
        %471 = vst [vmem:[%s218 + $0x28] sm:$0xff] %v413
        %472 = vst [vmem:[%s218 + $0x30] sm:$0xff] %v418
        %473 = vst [vmem:[%s218 + $0x38] sm:$0xff] %v423
        %474 = vst [vmem:[%s218 + $0x40] sm:$0xff] %v428
        %475 = vst [vmem:[%s218 + $0x48] sm:$0xff] %v433
        %476 = vst [vmem:[%s218 + $0x50] sm:$0xff] %v438
        %477 = vst [vmem:[%s218 + $0x58] sm:$0xff] %v443
        %478 = vst [vmem:[%s218 + $0x60] sm:$0xff] %v448
        %479 = vst [vmem:[%s218 + $0x68] sm:$0xff] %v453
        %480 = vst [vmem:[%s218 + $0x70] sm:$0xff] %v458
        %481 = vst [vmem:[%s218 + $0x78] sm:$0xff] %v463
        %v482 = vld [vmem:[#allocation2] sm:$0xff]
        %v483 = vld [vmem:[%s218] sm:$0xff]
        %484 = vmatprep.subr.mxu0 0.0
        %485 = vmatpush1.msra.mxu0 %v232
        %486 = vmatprep.subr.mxu0 0.0
        %487 = vmatpush1.msra.mxu0 %v233
        %488 = vmatprep.subr.mxu0 0.0
        %489 = vmatpush1.msra.mxu0 %v234
        %490 = vmatprep.subr.mxu0 0.0
        %491 = vmatpush1.msra.mxu0 %v235
        %492 = vmatprep.subr.mxu0 0.0
        %493 = vmatpush1.msra.mxu0 %v236
        %494 = vmatprep.subr.mxu0 0.0
        %495 = vmatpush1.msra.mxu0 %v237
        %496 = vmatprep.subr.mxu0 0.0
        %497 = vmatpush1.msra.mxu0 %v238
        %498 = vmatprep.subr.mxu0 0.0
        %499 = vmatpush1.msra.mxu0 %v239
        %500 = vmatprep.subr.mxu0 0.0
        %501 = vmatpush1.msra.mxu0 %v240
        %502 = vmatprep.subr.mxu0 0.0
        %503 = vmatpush1.msra.mxu0 %v241
        %504 = vmatprep.subr.mxu0 0.0
        %505 = vmatpush1.msra.mxu0 %v242
        %506 = vmatprep.subr.mxu0 0.0
        %507 = vmatpush1.msra.mxu0 %v243
        %508 = vmatprep.subr.mxu0 0.0
        %509 = vmatpush1.msra.mxu0 %v244
        %510 = vmatprep.subr.mxu0 0.0
        %511 = vmatpush1.msra.mxu0 %v245
        %512 = vmatprep.subr.mxu0 0.0
        %513 = vmatpush1.msra.mxu0 %v246
        %514 = vmatprep.subr.mxu0 0.0
        %515 = vmatpush1.msra.mxu0 %v247
        %516 = vmatprep.subr.mxu0 0.0
        %517 = vmatpush1.msra.mxu0 0.0
        %518 = vmatprep.subr.mxu0 0.0
        %519 = vmatpush1.msra.mxu0 0.0
        %520 = vmatprep.subr.mxu0 0.0
        %521 = vmatpush1.msra.mxu0 0.0
        %522 = vmatprep.subr.mxu0 0.0
        %523 = vmatpush1.msra.mxu0 0.0
        %524 = vmatprep.subr.mxu0 0.0
        %525 = vmatpush1.msra.mxu0 0.0
        %526 = vmatprep.subr.mxu0 0.0
        %527 = vmatpush1.msra.mxu0 0.0
        %528 = vmatprep.subr.mxu0 0.0
        %529 = vmatpush1.msra.mxu0 0.0
        %530 = vmatprep.subr.mxu0 0.0
        %531 = vmatpush1.msra.mxu0 0.0
        %532 = vmatprep.subr.mxu0 0.0
        %533 = vmatpush1.msra.mxu0 0.0
        %534 = vmatprep.subr.mxu0 0.0
        %535 = vmatpush1.msra.mxu0 0.0
        %536 = vmatprep.subr.mxu0 0.0
        %537 = vmatpush1.msra.mxu0 0.0
        %538 = vmatprep.subr.mxu0 0.0
        %539 = vmatpush1.msra.mxu0 0.0
        %540 = vmatprep.subr.mxu0 0.0
        %541 = vmatpush1.msra.mxu0 0.0
        %542 = vmatprep.subr.mxu0 0.0
        %543 = vmatpush1.msra.mxu0 0.0
        %544 = vmatprep.subr.mxu0 0.0
        %545 = vmatpush1.msra.mxu0 0.0
        %546 = vmatprep.subr.mxu0 0.0
        %547 = vmatpush1.msra.mxu0 0.0
        %548 = vmatprep.mubr.f32.mxu0 0.0
        %549 = vmatmul.mubr.f32.gmra.mrb[0].mxu0 %v482
        %v550 = vpop.f32.mrb[0].mxu0
        %v551 = vadd.f32 0.0, %v550
        %v552 = vpop.f32.mrb[0].mxu0
        %553 = vdwg.mxu0
        %v554 = vadd.f32 %v483, %v551
        %v555 = vtanh.pop %v554
        %556 = vst [vmem:[%s218] sm:$0xff] %v555
        %s557 = scalar_lea.vmem %s218, 8 [#allocation3]
        %v558 = vld [vmem:[%s557] sm:$0xff]
        %559 = vmatprep.subr.mxu0 0.0
        %560 = vmatpush1.msra.mxu0 %v232
        %561 = vmatprep.subr.mxu0 0.0
        %562 = vmatpush1.msra.mxu0 %v233
        %563 = vmatprep.subr.mxu0 0.0
        %564 = vmatpush1.msra.mxu0 %v234
        %565 = vmatprep.subr.mxu0 0.0
        %566 = vmatpush1.msra.mxu0 %v235
        %567 = vmatprep.subr.mxu0 0.0
        %568 = vmatpush1.msra.mxu0 %v236
        %569 = vmatprep.subr.mxu0 0.0
        %570 = vmatpush1.msra.mxu0 %v237
        %571 = vmatprep.subr.mxu0 0.0
        %572 = vmatpush1.msra.mxu0 %v238
        %573 = vmatprep.subr.mxu0 0.0
        %574 = vmatpush1.msra.mxu0 %v239
        %575 = vmatprep.subr.mxu0 0.0
        %576 = vmatpush1.msra.mxu0 %v240
        %577 = vmatprep.subr.mxu0 0.0
        %578 = vmatpush1.msra.mxu0 %v241
        %579 = vmatprep.subr.mxu0 0.0
        %580 = vmatpush1.msra.mxu0 %v242
        %581 = vmatprep.subr.mxu0 0.0
        %582 = vmatpush1.msra.mxu0 %v243
        %583 = vmatprep.subr.mxu0 0.0
        %584 = vmatpush1.msra.mxu0 %v244
        %585 = vmatprep.subr.mxu0 0.0
        %586 = vmatpush1.msra.mxu0 %v245
        %587 = vmatprep.subr.mxu0 0.0
        %588 = vmatpush1.msra.mxu0 %v246
        %589 = vmatprep.subr.mxu0 0.0
        %590 = vmatpush1.msra.mxu0 %v247
        %591 = vmatprep.subr.mxu0 0.0
        %592 = vmatpush1.msra.mxu0 0.0
        %593 = vmatprep.subr.mxu0 0.0
        %594 = vmatpush1.msra.mxu0 0.0
        %595 = vmatprep.subr.mxu0 0.0
        %596 = vmatpush1.msra.mxu0 0.0
        %597 = vmatprep.subr.mxu0 0.0
        %598 = vmatpush1.msra.mxu0 0.0
        %599 = vmatprep.subr.mxu0 0.0
        %600 = vmatpush1.msra.mxu0 0.0
        %601 = vmatprep.subr.mxu0 0.0
        %602 = vmatpush1.msra.mxu0 0.0
        %603 = vmatprep.subr.mxu0 0.0
        %604 = vmatpush1.msra.mxu0 0.0
        %605 = vmatprep.subr.mxu0 0.0
        %606 = vmatpush1.msra.mxu0 0.0
        %607 = vmatprep.subr.mxu0 0.0
        %608 = vmatpush1.msra.mxu0 0.0
        %609 = vmatprep.subr.mxu0 0.0
        %610 = vmatpush1.msra.mxu0 0.0
        %611 = vmatprep.subr.mxu0 0.0
        %612 = vmatpush1.msra.mxu0 0.0
        %613 = vmatprep.subr.mxu0 0.0
        %614 = vmatpush1.msra.mxu0 0.0
        %615 = vmatprep.subr.mxu0 0.0
        %616 = vmatpush1.msra.mxu0 0.0
        %617 = vmatprep.subr.mxu0 0.0
        %618 = vmatpush1.msra.mxu0 0.0
        %619 = vmatprep.subr.mxu0 0.0
        %620 = vmatpush1.msra.mxu0 0.0
        %621 = vmatprep.subr.mxu0 0.0
        %622 = vmatpush1.msra.mxu0 0.0
        %623 = vmatprep.mubr.f32.mxu0 0.0
        %624 = vmatmul.mubr.f32.gmra.mrb[0].mxu0 %v555
        %v625 = vpop.f32.mrb[0].mxu0
        %v626 = vadd.f32 0.0, %v625
        %v627 = vpop.f32.mrb[0].mxu0
        %628 = vdwg.mxu0
        %v629 = vadd.f32 %v558, %v626
        %v630 = vtanh.pop %v629
        %631 = vst [vmem:[%s557] sm:$0xff] %v630
        %s632 = scalar_lea.vmem %s218, 16 [#allocation3]
        %v633 = vld [vmem:[%s632] sm:$0xff]
        %634 = vmatprep.subr.mxu0 0.0
        %635 = vmatpush1.msra.mxu0 %v232
        %636 = vmatprep.subr.mxu0 0.0
        %637 = vmatpush1.msra.mxu0 %v233
        %638 = vmatprep.subr.mxu0 0.0
        %639 = vmatpush1.msra.mxu0 %v234
        %640 = vmatprep.subr.mxu0 0.0
        %641 = vmatpush1.msra.mxu0 %v235
        %642 = vmatprep.subr.mxu0 0.0
        %643 = vmatpush1.msra.mxu0 %v236
        %644 = vmatprep.subr.mxu0 0.0
        %645 = vmatpush1.msra.mxu0 %v237
        %646 = vmatprep.subr.mxu0 0.0
        %647 = vmatpush1.msra.mxu0 %v238
        %648 = vmatprep.subr.mxu0 0.0
        %649 = vmatpush1.msra.mxu0 %v239
        %650 = vmatprep.subr.mxu0 0.0
        %651 = vmatpush1.msra.mxu0 %v240
        %652 = vmatprep.subr.mxu0 0.0
        %653 = vmatpush1.msra.mxu0 %v241
        %654 = vmatprep.subr.mxu0 0.0
        %655 = vmatpush1.msra.mxu0 %v242
        %656 = vmatprep.subr.mxu0 0.0
        %657 = vmatpush1.msra.mxu0 %v243
        %658 = vmatprep.subr.mxu0 0.0
        %659 = vmatpush1.msra.mxu0 %v244
        %660 = vmatprep.subr.mxu0 0.0
        %661 = vmatpush1.msra.mxu0 %v245
        %662 = vmatprep.subr.mxu0 0.0
        %663 = vmatpush1.msra.mxu0 %v246
        %664 = vmatprep.subr.mxu0 0.0
        %665 = vmatpush1.msra.mxu0 %v247
        %666 = vmatprep.subr.mxu0 0.0
        %667 = vmatpush1.msra.mxu0 0.0
        %668 = vmatprep.subr.mxu0 0.0
        %669 = vmatpush1.msra.mxu0 0.0
        %670 = vmatprep.subr.mxu0 0.0
        %671 = vmatpush1.msra.mxu0 0.0
        %672 = vmatprep.subr.mxu0 0.0
        %673 = vmatpush1.msra.mxu0 0.0
        %674 = vmatprep.subr.mxu0 0.0
        %675 = vmatpush1.msra.mxu0 0.0
        %676 = vmatprep.subr.mxu0 0.0
        %677 = vmatpush1.msra.mxu0 0.0
        %678 = vmatprep.subr.mxu0 0.0
        %679 = vmatpush1.msra.mxu0 0.0
        %680 = vmatprep.subr.mxu0 0.0
        %681 = vmatpush1.msra.mxu0 0.0
        %682 = vmatprep.subr.mxu0 0.0
        %683 = vmatpush1.msra.mxu0 0.0
        %684 = vmatprep.subr.mxu0 0.0
        %685 = vmatpush1.msra.mxu0 0.0
        %686 = vmatprep.subr.mxu0 0.0
        %687 = vmatpush1.msra.mxu0 0.0
        %688 = vmatprep.subr.mxu0 0.0
        %689 = vmatpush1.msra.mxu0 0.0
        %690 = vmatprep.subr.mxu0 0.0
        %691 = vmatpush1.msra.mxu0 0.0
        %692 = vmatprep.subr.mxu0 0.0
        %693 = vmatpush1.msra.mxu0 0.0
        %694 = vmatprep.subr.mxu0 0.0
        %695 = vmatpush1.msra.mxu0 0.0
        %696 = vmatprep.subr.mxu0 0.0
        %697 = vmatpush1.msra.mxu0 0.0
        %698 = vmatprep.mubr.f32.mxu0 0.0
        %699 = vmatmul.mubr.f32.gmra.mrb[0].mxu0 %v630
        %v700 = vpop.f32.mrb[0].mxu0
        %v701 = vadd.f32 0.0, %v700
        %v702 = vpop.f32.mrb[0].mxu0
        %703 = vdwg.mxu0
        %v704 = vadd.f32 %v633, %v701
        %v705 = vtanh.pop %v704
        %706 = vst [vmem:[%s632] sm:$0xff] %v705
        %s707 = scalar_lea.vmem %s218, 24 [#allocation3]
        %v708 = vld [vmem:[%s707] sm:$0xff]
        %709 = vmatprep.subr.mxu0 0.0
        %710 = vmatpush1.msra.mxu0 %v232
        %711 = vmatprep.subr.mxu0 0.0
        %712 = vmatpush1.msra.mxu0 %v233
        %713 = vmatprep.subr.mxu0 0.0
        %714 = vmatpush1.msra.mxu0 %v234
        %715 = vmatprep.subr.mxu0 0.0
        %716 = vmatpush1.msra.mxu0 %v235
        %717 = vmatprep.subr.mxu0 0.0
        %718 = vmatpush1.msra.mxu0 %v236
        %719 = vmatprep.subr.mxu0 0.0
        %720 = vmatpush1.msra.mxu0 %v237
        %721 = vmatprep.subr.mxu0 0.0
        %722 = vmatpush1.msra.mxu0 %v238
        %723 = vmatprep.subr.mxu0 0.0
        %724 = vmatpush1.msra.mxu0 %v239
        %725 = vmatprep.subr.mxu0 0.0
        %726 = vmatpush1.msra.mxu0 %v240
        %727 = vmatprep.subr.mxu0 0.0
        %728 = vmatpush1.msra.mxu0 %v241
        %729 = vmatprep.subr.mxu0 0.0
        %730 = vmatpush1.msra.mxu0 %v242
        %731 = vmatprep.subr.mxu0 0.0
        %732 = vmatpush1.msra.mxu0 %v243
        %733 = vmatprep.subr.mxu0 0.0
        %734 = vmatpush1.msra.mxu0 %v244
        %735 = vmatprep.subr.mxu0 0.0
        %736 = vmatpush1.msra.mxu0 %v245
        %737 = vmatprep.subr.mxu0 0.0
        %738 = vmatpush1.msra.mxu0 %v246
        %739 = vmatprep.subr.mxu0 0.0
        %740 = vmatpush1.msra.mxu0 %v247
        %741 = vmatprep.subr.mxu0 0.0
        %742 = vmatpush1.msra.mxu0 0.0
        %743 = vmatprep.subr.mxu0 0.0
        %744 = vmatpush1.msra.mxu0 0.0
        %745 = vmatprep.subr.mxu0 0.0
        %746 = vmatpush1.msra.mxu0 0.0
        %747 = vmatprep.subr.mxu0 0.0
        %748 = vmatpush1.msra.mxu0 0.0
        %749 = vmatprep.subr.mxu0 0.0
        %750 = vmatpush1.msra.mxu0 0.0
        %751 = vmatprep.subr.mxu0 0.0
        %752 = vmatpush1.msra.mxu0 0.0
        %753 = vmatprep.subr.mxu0 0.0
        %754 = vmatpush1.msra.mxu0 0.0
        %755 = vmatprep.subr.mxu0 0.0
        %756 = vmatpush1.msra.mxu0 0.0
        %757 = vmatprep.subr.mxu0 0.0
        %758 = vmatpush1.msra.mxu0 0.0
        %759 = vmatprep.subr.mxu0 0.0
        %760 = vmatpush1.msra.mxu0 0.0
        %761 = vmatprep.subr.mxu0 0.0
        %762 = vmatpush1.msra.mxu0 0.0
        %763 = vmatprep.subr.mxu0 0.0
        %764 = vmatpush1.msra.mxu0 0.0
        %765 = vmatprep.subr.mxu0 0.0
        %766 = vmatpush1.msra.mxu0 0.0
        %767 = vmatprep.subr.mxu0 0.0
        %768 = vmatpush1.msra.mxu0 0.0
        %769 = vmatprep.subr.mxu0 0.0
        %770 = vmatpush1.msra.mxu0 0.0
        %771 = vmatprep.subr.mxu0 0.0
        %772 = vmatpush1.msra.mxu0 0.0
        %773 = vmatprep.mubr.f32.mxu0 0.0
        %774 = vmatmul.mubr.f32.gmra.mrb[0].mxu0 %v705
        %v775 = vpop.f32.mrb[0].mxu0
        %v776 = vadd.f32 0.0, %v775
        %v777 = vpop.f32.mrb[0].mxu0
        %778 = vdwg.mxu0
        %v779 = vadd.f32 %v708, %v776
        %v780 = vtanh.pop %v779
        %781 = vst [vmem:[%s707] sm:$0xff] %v780
        %s782 = scalar_lea.vmem %s218, 32 [#allocation3]
        %v783 = vld [vmem:[%s782] sm:$0xff]
        %784 = vmatprep.subr.mxu0 0.0
        %785 = vmatpush1.msra.mxu0 %v232
        %786 = vmatprep.subr.mxu0 0.0
        %787 = vmatpush1.msra.mxu0 %v233
        %788 = vmatprep.subr.mxu0 0.0
        %789 = vmatpush1.msra.mxu0 %v234
        %790 = vmatprep.subr.mxu0 0.0
        %791 = vmatpush1.msra.mxu0 %v235
        %792 = vmatprep.subr.mxu0 0.0
        %793 = vmatpush1.msra.mxu0 %v236
        %794 = vmatprep.subr.mxu0 0.0
        %795 = vmatpush1.msra.mxu0 %v237
        %796 = vmatprep.subr.mxu0 0.0
        %797 = vmatpush1.msra.mxu0 %v238
        %798 = vmatprep.subr.mxu0 0.0
        %799 = vmatpush1.msra.mxu0 %v239
        %800 = vmatprep.subr.mxu0 0.0
        %801 = vmatpush1.msra.mxu0 %v240
        %802 = vmatprep.subr.mxu0 0.0
        %803 = vmatpush1.msra.mxu0 %v241
        %804 = vmatprep.subr.mxu0 0.0
        %805 = vmatpush1.msra.mxu0 %v242
        %806 = vmatprep.subr.mxu0 0.0
        %807 = vmatpush1.msra.mxu0 %v243
        %808 = vmatprep.subr.mxu0 0.0
        %809 = vmatpush1.msra.mxu0 %v244
        %810 = vmatprep.subr.mxu0 0.0
        %811 = vmatpush1.msra.mxu0 %v245
        %812 = vmatprep.subr.mxu0 0.0
        %813 = vmatpush1.msra.mxu0 %v246
        %814 = vmatprep.subr.mxu0 0.0
        %815 = vmatpush1.msra.mxu0 %v247
        %816 = vmatprep.subr.mxu0 0.0
        %817 = vmatpush1.msra.mxu0 0.0
        %818 = vmatprep.subr.mxu0 0.0
        %819 = vmatpush1.msra.mxu0 0.0
        %820 = vmatprep.subr.mxu0 0.0
        %821 = vmatpush1.msra.mxu0 0.0
        %822 = vmatprep.subr.mxu0 0.0
        %823 = vmatpush1.msra.mxu0 0.0
        %824 = vmatprep.subr.mxu0 0.0
        %825 = vmatpush1.msra.mxu0 0.0
        %826 = vmatprep.subr.mxu0 0.0
        %827 = vmatpush1.msra.mxu0 0.0
        %828 = vmatprep.subr.mxu0 0.0
        %829 = vmatpush1.msra.mxu0 0.0
        %830 = vmatprep.subr.mxu0 0.0
        %831 = vmatpush1.msra.mxu0 0.0
        %832 = vmatprep.subr.mxu0 0.0
        %833 = vmatpush1.msra.mxu0 0.0
        %834 = vmatprep.subr.mxu0 0.0
        %835 = vmatpush1.msra.mxu0 0.0
        %836 = vmatprep.subr.mxu0 0.0
        %837 = vmatpush1.msra.mxu0 0.0
        %838 = vmatprep.subr.mxu0 0.0
        %839 = vmatpush1.msra.mxu0 0.0
        %840 = vmatprep.subr.mxu0 0.0
        %841 = vmatpush1.msra.mxu0 0.0
        %842 = vmatprep.subr.mxu0 0.0
        %843 = vmatpush1.msra.mxu0 0.0
        %844 = vmatprep.subr.mxu0 0.0
        %845 = vmatpush1.msra.mxu0 0.0
        %846 = vmatprep.subr.mxu0 0.0
        %847 = vmatpush1.msra.mxu0 0.0
        %848 = vmatprep.mubr.f32.mxu0 0.0
        %849 = vmatmul.mubr.f32.gmra.mrb[0].mxu0 %v780
        %v850 = vpop.f32.mrb[0].mxu0
        %v851 = vadd.f32 0.0, %v850
        %v852 = vpop.f32.mrb[0].mxu0
        %853 = vdwg.mxu0
        %v854 = vadd.f32 %v783, %v851
        %v855 = vtanh.pop %v854
        %856 = vst [vmem:[%s782] sm:$0xff] %v855
        %s857 = scalar_lea.vmem %s218, 40 [#allocation3]
        %v858 = vld [vmem:[%s857] sm:$0xff]
        %859 = vmatprep.subr.mxu0 0.0
        %860 = vmatpush1.msra.mxu0 %v232
        %861 = vmatprep.subr.mxu0 0.0
        %862 = vmatpush1.msra.mxu0 %v233
        %863 = vmatprep.subr.mxu0 0.0
        %864 = vmatpush1.msra.mxu0 %v234
        %865 = vmatprep.subr.mxu0 0.0
        %866 = vmatpush1.msra.mxu0 %v235
        %867 = vmatprep.subr.mxu0 0.0
        %868 = vmatpush1.msra.mxu0 %v236
        %869 = vmatprep.subr.mxu0 0.0
        %870 = vmatpush1.msra.mxu0 %v237
        %871 = vmatprep.subr.mxu0 0.0
        %872 = vmatpush1.msra.mxu0 %v238
        %873 = vmatprep.subr.mxu0 0.0
        %874 = vmatpush1.msra.mxu0 %v239
        %875 = vmatprep.subr.mxu0 0.0
        %876 = vmatpush1.msra.mxu0 %v240
        %877 = vmatprep.subr.mxu0 0.0
        %878 = vmatpush1.msra.mxu0 %v241
        %879 = vmatprep.subr.mxu0 0.0
        %880 = vmatpush1.msra.mxu0 %v242
        %881 = vmatprep.subr.mxu0 0.0
        %882 = vmatpush1.msra.mxu0 %v243
        %883 = vmatprep.subr.mxu0 0.0
        %884 = vmatpush1.msra.mxu0 %v244
        %885 = vmatprep.subr.mxu0 0.0
        %886 = vmatpush1.msra.mxu0 %v245
        %887 = vmatprep.subr.mxu0 0.0
        %888 = vmatpush1.msra.mxu0 %v246
        %889 = vmatprep.subr.mxu0 0.0
        %890 = vmatpush1.msra.mxu0 %v247
        %891 = vmatprep.subr.mxu0 0.0
        %892 = vmatpush1.msra.mxu0 0.0
        %893 = vmatprep.subr.mxu0 0.0
        %894 = vmatpush1.msra.mxu0 0.0
        %895 = vmatprep.subr.mxu0 0.0
        %896 = vmatpush1.msra.mxu0 0.0
        %897 = vmatprep.subr.mxu0 0.0
        %898 = vmatpush1.msra.mxu0 0.0
        %899 = vmatprep.subr.mxu0 0.0
        %900 = vmatpush1.msra.mxu0 0.0
        %901 = vmatprep.subr.mxu0 0.0
        %902 = vmatpush1.msra.mxu0 0.0
        %903 = vmatprep.subr.mxu0 0.0
        %904 = vmatpush1.msra.mxu0 0.0
        %905 = vmatprep.subr.mxu0 0.0
        %906 = vmatpush1.msra.mxu0 0.0
        %907 = vmatprep.subr.mxu0 0.0
        %908 = vmatpush1.msra.mxu0 0.0
        %909 = vmatprep.subr.mxu0 0.0
        %910 = vmatpush1.msra.mxu0 0.0
        %911 = vmatprep.subr.mxu0 0.0
        %912 = vmatpush1.msra.mxu0 0.0
        %913 = vmatprep.subr.mxu0 0.0
        %914 = vmatpush1.msra.mxu0 0.0
        %915 = vmatprep.subr.mxu0 0.0
        %916 = vmatpush1.msra.mxu0 0.0
        %917 = vmatprep.subr.mxu0 0.0
        %918 = vmatpush1.msra.mxu0 0.0
        %919 = vmatprep.subr.mxu0 0.0
        %920 = vmatpush1.msra.mxu0 0.0
        %921 = vmatprep.subr.mxu0 0.0
        %922 = vmatpush1.msra.mxu0 0.0
        %923 = vmatprep.mubr.f32.mxu0 0.0
        %924 = vmatmul.mubr.f32.gmra.mrb[0].mxu0 %v855
        %v925 = vpop.f32.mrb[0].mxu0
        %v926 = vadd.f32 0.0, %v925
        %v927 = vpop.f32.mrb[0].mxu0
        %928 = vdwg.mxu0
        %v929 = vadd.f32 %v858, %v926
        %v930 = vtanh.pop %v929
        %931 = vst [vmem:[%s857] sm:$0xff] %v930
        %s932 = scalar_lea.vmem %s218, 48 [#allocation3]
        %v933 = vld [vmem:[%s932] sm:$0xff]
        %934 = vmatprep.subr.mxu0 0.0
        %935 = vmatpush1.msra.mxu0 %v232
        %936 = vmatprep.subr.mxu0 0.0
        %937 = vmatpush1.msra.mxu0 %v233
        %938 = vmatprep.subr.mxu0 0.0
        %939 = vmatpush1.msra.mxu0 %v234
        %940 = vmatprep.subr.mxu0 0.0
        %941 = vmatpush1.msra.mxu0 %v235
        %942 = vmatprep.subr.mxu0 0.0
        %943 = vmatpush1.msra.mxu0 %v236
        %944 = vmatprep.subr.mxu0 0.0
        %945 = vmatpush1.msra.mxu0 %v237
        %946 = vmatprep.subr.mxu0 0.0
        %947 = vmatpush1.msra.mxu0 %v238
        %948 = vmatprep.subr.mxu0 0.0
        %949 = vmatpush1.msra.mxu0 %v239
        %950 = vmatprep.subr.mxu0 0.0
        %951 = vmatpush1.msra.mxu0 %v240
        %952 = vmatprep.subr.mxu0 0.0
        %953 = vmatpush1.msra.mxu0 %v241
        %954 = vmatprep.subr.mxu0 0.0
        %955 = vmatpush1.msra.mxu0 %v242
        %956 = vmatprep.subr.mxu0 0.0
        %957 = vmatpush1.msra.mxu0 %v243
        %958 = vmatprep.subr.mxu0 0.0
        %959 = vmatpush1.msra.mxu0 %v244
        %960 = vmatprep.subr.mxu0 0.0
        %961 = vmatpush1.msra.mxu0 %v245
        %962 = vmatprep.subr.mxu0 0.0
        %963 = vmatpush1.msra.mxu0 %v246
        %964 = vmatprep.subr.mxu0 0.0
        %965 = vmatpush1.msra.mxu0 %v247
        %966 = vmatprep.subr.mxu0 0.0
        %967 = vmatpush1.msra.mxu0 0.0
        %968 = vmatprep.subr.mxu0 0.0
        %969 = vmatpush1.msra.mxu0 0.0
        %970 = vmatprep.subr.mxu0 0.0
        %971 = vmatpush1.msra.mxu0 0.0
        %972 = vmatprep.subr.mxu0 0.0
        %973 = vmatpush1.msra.mxu0 0.0
        %974 = vmatprep.subr.mxu0 0.0
        %975 = vmatpush1.msra.mxu0 0.0
        %976 = vmatprep.subr.mxu0 0.0
        %977 = vmatpush1.msra.mxu0 0.0
        %978 = vmatprep.subr.mxu0 0.0
        %979 = vmatpush1.msra.mxu0 0.0
        %980 = vmatprep.subr.mxu0 0.0
        %981 = vmatpush1.msra.mxu0 0.0
        %982 = vmatprep.subr.mxu0 0.0
        %983 = vmatpush1.msra.mxu0 0.0
        %984 = vmatprep.subr.mxu0 0.0
        %985 = vmatpush1.msra.mxu0 0.0
        %986 = vmatprep.subr.mxu0 0.0
        %987 = vmatpush1.msra.mxu0 0.0
        %988 = vmatprep.subr.mxu0 0.0
        %989 = vmatpush1.msra.mxu0 0.0
        %990 = vmatprep.subr.mxu0 0.0
        %991 = vmatpush1.msra.mxu0 0.0
        %992 = vmatprep.subr.mxu0 0.0
        %993 = vmatpush1.msra.mxu0 0.0
        %994 = vmatprep.subr.mxu0 0.0
        %995 = vmatpush1.msra.mxu0 0.0
        %996 = vmatprep.subr.mxu0 0.0
        %997 = vmatpush1.msra.mxu0 0.0
        %998 = vmatprep.mubr.f32.mxu0 0.0
        %999 = vmatmul.mubr.f32.gmra.mrb[0].mxu0 %v930
        %v1000 = vpop.f32.mrb[0].mxu0
        %v1001 = vadd.f32 0.0, %v1000
        %v1002 = vpop.f32.mrb[0].mxu0
        %1003 = vdwg.mxu0
        %v1004 = vadd.f32 %v933, %v1001
        %v1005 = vtanh.pop %v1004
        %1006 = vst [vmem:[%s932] sm:$0xff] %v1005
        %s1007 = scalar_lea.vmem %s218, 56 [#allocation3]
        %v1008 = vld [vmem:[%s1007] sm:$0xff]
        %1009 = vmatprep.subr.mxu0 0.0
        %1010 = vmatpush1.msra.mxu0 %v232
        %1011 = vmatprep.subr.mxu0 0.0
        %1012 = vmatpush1.msra.mxu0 %v233
        %1013 = vmatprep.subr.mxu0 0.0
        %1014 = vmatpush1.msra.mxu0 %v234
        %1015 = vmatprep.subr.mxu0 0.0
        %1016 = vmatpush1.msra.mxu0 %v235
        %1017 = vmatprep.subr.mxu0 0.0
        %1018 = vmatpush1.msra.mxu0 %v236
        %1019 = vmatprep.subr.mxu0 0.0
        %1020 = vmatpush1.msra.mxu0 %v237
        %1021 = vmatprep.subr.mxu0 0.0
        %1022 = vmatpush1.msra.mxu0 %v238
        %1023 = vmatprep.subr.mxu0 0.0
        %1024 = vmatpush1.msra.mxu0 %v239
        %1025 = vmatprep.subr.mxu0 0.0
        %1026 = vmatpush1.msra.mxu0 %v240
        %1027 = vmatprep.subr.mxu0 0.0
        %1028 = vmatpush1.msra.mxu0 %v241
        %1029 = vmatprep.subr.mxu0 0.0
        %1030 = vmatpush1.msra.mxu0 %v242
        %1031 = vmatprep.subr.mxu0 0.0
        %1032 = vmatpush1.msra.mxu0 %v243
        %1033 = vmatprep.subr.mxu0 0.0
        %1034 = vmatpush1.msra.mxu0 %v244
        %1035 = vmatprep.subr.mxu0 0.0
        %1036 = vmatpush1.msra.mxu0 %v245
        %1037 = vmatprep.subr.mxu0 0.0
        %1038 = vmatpush1.msra.mxu0 %v246
        %1039 = vmatprep.subr.mxu0 0.0
        %1040 = vmatpush1.msra.mxu0 %v247
        %1041 = vmatprep.subr.mxu0 0.0
        %1042 = vmatpush1.msra.mxu0 0.0
        %1043 = vmatprep.subr.mxu0 0.0
        %1044 = vmatpush1.msra.mxu0 0.0
        %1045 = vmatprep.subr.mxu0 0.0
        %1046 = vmatpush1.msra.mxu0 0.0
        %1047 = vmatprep.subr.mxu0 0.0
        %1048 = vmatpush1.msra.mxu0 0.0
        %1049 = vmatprep.subr.mxu0 0.0
        %1050 = vmatpush1.msra.mxu0 0.0
        %1051 = vmatprep.subr.mxu0 0.0
        %1052 = vmatpush1.msra.mxu0 0.0
        %1053 = vmatprep.subr.mxu0 0.0
        %1054 = vmatpush1.msra.mxu0 0.0
        %1055 = vmatprep.subr.mxu0 0.0
        %1056 = vmatpush1.msra.mxu0 0.0
        %1057 = vmatprep.subr.mxu0 0.0
        %1058 = vmatpush1.msra.mxu0 0.0
        %1059 = vmatprep.subr.mxu0 0.0
        %1060 = vmatpush1.msra.mxu0 0.0
        %1061 = vmatprep.subr.mxu0 0.0
        %1062 = vmatpush1.msra.mxu0 0.0
        %1063 = vmatprep.subr.mxu0 0.0
        %1064 = vmatpush1.msra.mxu0 0.0
        %1065 = vmatprep.subr.mxu0 0.0
        %1066 = vmatpush1.msra.mxu0 0.0
        %1067 = vmatprep.subr.mxu0 0.0
        %1068 = vmatpush1.msra.mxu0 0.0
        %1069 = vmatprep.subr.mxu0 0.0
        %1070 = vmatpush1.msra.mxu0 0.0
        %1071 = vmatprep.subr.mxu0 0.0
        %1072 = vmatpush1.msra.mxu0 0.0
        %1073 = vmatprep.mubr.f32.mxu0 0.0
        %1074 = vmatmul.mubr.f32.gmra.mrb[0].mxu0 %v1005
        %v1075 = vpop.f32.mrb[0].mxu0
        %v1076 = vadd.f32 0.0, %v1075
        %v1077 = vpop.f32.mrb[0].mxu0
        %1078 = vdwg.mxu0
        %v1079 = vadd.f32 %v1008, %v1076
        %v1080 = vtanh.pop %v1079
        %1081 = vst [vmem:[%s1007] sm:$0xff] %v1080
        %s1082 = scalar_lea.vmem %s218, 64 [#allocation3]
        %v1083 = vld [vmem:[%s1082] sm:$0xff]
        %1084 = vmatprep.subr.mxu0 0.0
        %1085 = vmatpush1.msra.mxu0 %v232
        %1086 = vmatprep.subr.mxu0 0.0
        %1087 = vmatpush1.msra.mxu0 %v233
        %1088 = vmatprep.subr.mxu0 0.0
        %1089 = vmatpush1.msra.mxu0 %v234
        %1090 = vmatprep.subr.mxu0 0.0
        %1091 = vmatpush1.msra.mxu0 %v235
        %1092 = vmatprep.subr.mxu0 0.0
        %1093 = vmatpush1.msra.mxu0 %v236
        %1094 = vmatprep.subr.mxu0 0.0
        %1095 = vmatpush1.msra.mxu0 %v237
        %1096 = vmatprep.subr.mxu0 0.0
        %1097 = vmatpush1.msra.mxu0 %v238
        %1098 = vmatprep.subr.mxu0 0.0
        %1099 = vmatpush1.msra.mxu0 %v239
        %1100 = vmatprep.subr.mxu0 0.0
        %1101 = vmatpush1.msra.mxu0 %v240
        %1102 = vmatprep.subr.mxu0 0.0
        %1103 = vmatpush1.msra.mxu0 %v241
        %1104 = vmatprep.subr.mxu0 0.0
        %1105 = vmatpush1.msra.mxu0 %v242
        %1106 = vmatprep.subr.mxu0 0.0
        %1107 = vmatpush1.msra.mxu0 %v243
        %1108 = vmatprep.subr.mxu0 0.0
        %1109 = vmatpush1.msra.mxu0 %v244
        %1110 = vmatprep.subr.mxu0 0.0
        %1111 = vmatpush1.msra.mxu0 %v245
        %1112 = vmatprep.subr.mxu0 0.0
        %1113 = vmatpush1.msra.mxu0 %v246
        %1114 = vmatprep.subr.mxu0 0.0
        %1115 = vmatpush1.msra.mxu0 %v247
        %1116 = vmatprep.subr.mxu0 0.0
        %1117 = vmatpush1.msra.mxu0 0.0
        %1118 = vmatprep.subr.mxu0 0.0
        %1119 = vmatpush1.msra.mxu0 0.0
        %1120 = vmatprep.subr.mxu0 0.0
        %1121 = vmatpush1.msra.mxu0 0.0
        %1122 = vmatprep.subr.mxu0 0.0
        %1123 = vmatpush1.msra.mxu0 0.0
        %1124 = vmatprep.subr.mxu0 0.0
        %1125 = vmatpush1.msra.mxu0 0.0
        %1126 = vmatprep.subr.mxu0 0.0
        %1127 = vmatpush1.msra.mxu0 0.0
        %1128 = vmatprep.subr.mxu0 0.0
        %1129 = vmatpush1.msra.mxu0 0.0
        %1130 = vmatprep.subr.mxu0 0.0
        %1131 = vmatpush1.msra.mxu0 0.0
        %1132 = vmatprep.subr.mxu0 0.0
        %1133 = vmatpush1.msra.mxu0 0.0
        %1134 = vmatprep.subr.mxu0 0.0
        %1135 = vmatpush1.msra.mxu0 0.0
        %1136 = vmatprep.subr.mxu0 0.0
        %1137 = vmatpush1.msra.mxu0 0.0
        %1138 = vmatprep.subr.mxu0 0.0
        %1139 = vmatpush1.msra.mxu0 0.0
        %1140 = vmatprep.subr.mxu0 0.0
        %1141 = vmatpush1.msra.mxu0 0.0
        %1142 = vmatprep.subr.mxu0 0.0
        %1143 = vmatpush1.msra.mxu0 0.0
        %1144 = vmatprep.subr.mxu0 0.0
        %1145 = vmatpush1.msra.mxu0 0.0
        %1146 = vmatprep.subr.mxu0 0.0
        %1147 = vmatpush1.msra.mxu0 0.0
        %1148 = vmatprep.mubr.f32.mxu0 0.0
        %1149 = vmatmul.mubr.f32.gmra.mrb[0].mxu0 %v1080
        %v1150 = vpop.f32.mrb[0].mxu0
        %v1151 = vadd.f32 0.0, %v1150
        %v1152 = vpop.f32.mrb[0].mxu0
        %1153 = vdwg.mxu0
        %v1154 = vadd.f32 %v1083, %v1151
        %v1155 = vtanh.pop %v1154
        %1156 = vst [vmem:[%s1082] sm:$0xff] %v1155
        %s1157 = scalar_lea.vmem %s218, 72 [#allocation3]
        %v1158 = vld [vmem:[%s1157] sm:$0xff]
        %1159 = vmatprep.subr.mxu0 0.0
        %1160 = vmatpush1.msra.mxu0 %v232
        %1161 = vmatprep.subr.mxu0 0.0
        %1162 = vmatpush1.msra.mxu0 %v233
        %1163 = vmatprep.subr.mxu0 0.0
        %1164 = vmatpush1.msra.mxu0 %v234
        %1165 = vmatprep.subr.mxu0 0.0
        %1166 = vmatpush1.msra.mxu0 %v235
        %1167 = vmatprep.subr.mxu0 0.0
        %1168 = vmatpush1.msra.mxu0 %v236
        %1169 = vmatprep.subr.mxu0 0.0
        %1170 = vmatpush1.msra.mxu0 %v237
        %1171 = vmatprep.subr.mxu0 0.0
        %1172 = vmatpush1.msra.mxu0 %v238
        %1173 = vmatprep.subr.mxu0 0.0
        %1174 = vmatpush1.msra.mxu0 %v239
        %1175 = vmatprep.subr.mxu0 0.0
        %1176 = vmatpush1.msra.mxu0 %v240
        %1177 = vmatprep.subr.mxu0 0.0
        %1178 = vmatpush1.msra.mxu0 %v241
        %1179 = vmatprep.subr.mxu0 0.0
        %1180 = vmatpush1.msra.mxu0 %v242
        %1181 = vmatprep.subr.mxu0 0.0
        %1182 = vmatpush1.msra.mxu0 %v243
        %1183 = vmatprep.subr.mxu0 0.0
        %1184 = vmatpush1.msra.mxu0 %v244
        %1185 = vmatprep.subr.mxu0 0.0
        %1186 = vmatpush1.msra.mxu0 %v245
        %1187 = vmatprep.subr.mxu0 0.0
        %1188 = vmatpush1.msra.mxu0 %v246
        %1189 = vmatprep.subr.mxu0 0.0
        %1190 = vmatpush1.msra.mxu0 %v247
        %1191 = vmatprep.subr.mxu0 0.0
        %1192 = vmatpush1.msra.mxu0 0.0
        %1193 = vmatprep.subr.mxu0 0.0
        %1194 = vmatpush1.msra.mxu0 0.0
        %1195 = vmatprep.subr.mxu0 0.0
        %1196 = vmatpush1.msra.mxu0 0.0
        %1197 = vmatprep.subr.mxu0 0.0
        %1198 = vmatpush1.msra.mxu0 0.0
        %1199 = vmatprep.subr.mxu0 0.0
        %1200 = vmatpush1.msra.mxu0 0.0
        %1201 = vmatprep.subr.mxu0 0.0
        %1202 = vmatpush1.msra.mxu0 0.0
        %1203 = vmatprep.subr.mxu0 0.0
        %1204 = vmatpush1.msra.mxu0 0.0
        %1205 = vmatprep.subr.mxu0 0.0
        %1206 = vmatpush1.msra.mxu0 0.0
        %1207 = vmatprep.subr.mxu0 0.0
        %1208 = vmatpush1.msra.mxu0 0.0
        %1209 = vmatprep.subr.mxu0 0.0
        %1210 = vmatpush1.msra.mxu0 0.0
        %1211 = vmatprep.subr.mxu0 0.0
        %1212 = vmatpush1.msra.mxu0 0.0
        %1213 = vmatprep.subr.mxu0 0.0
        %1214 = vmatpush1.msra.mxu0 0.0
        %1215 = vmatprep.subr.mxu0 0.0
        %1216 = vmatpush1.msra.mxu0 0.0
        %1217 = vmatprep.subr.mxu0 0.0
        %1218 = vmatpush1.msra.mxu0 0.0
        %1219 = vmatprep.subr.mxu0 0.0
        %1220 = vmatpush1.msra.mxu0 0.0
        %1221 = vmatprep.subr.mxu0 0.0
        %1222 = vmatpush1.msra.mxu0 0.0
        %1223 = vmatprep.mubr.f32.mxu0 0.0
        %1224 = vmatmul.mubr.f32.gmra.mrb[0].mxu0 %v1155
        %v1225 = vpop.f32.mrb[0].mxu0
        %v1226 = vadd.f32 0.0, %v1225
        %v1227 = vpop.f32.mrb[0].mxu0
        %1228 = vdwg.mxu0
        %v1229 = vadd.f32 %v1158, %v1226
        %v1230 = vtanh.pop %v1229
        %1231 = vst [vmem:[%s1157] sm:$0xff] %v1230
        %s1232 = scalar_lea.vmem %s218, 80 [#allocation3]
        %v1233 = vld [vmem:[%s1232] sm:$0xff]
        %1234 = vmatprep.subr.mxu0 0.0
        %1235 = vmatpush1.msra.mxu0 %v232
        %1236 = vmatprep.subr.mxu0 0.0
        %1237 = vmatpush1.msra.mxu0 %v233
        %1238 = vmatprep.subr.mxu0 0.0
        %1239 = vmatpush1.msra.mxu0 %v234
        %1240 = vmatprep.subr.mxu0 0.0
        %1241 = vmatpush1.msra.mxu0 %v235
        %1242 = vmatprep.subr.mxu0 0.0
        %1243 = vmatpush1.msra.mxu0 %v236
        %1244 = vmatprep.subr.mxu0 0.0
        %1245 = vmatpush1.msra.mxu0 %v237
        %1246 = vmatprep.subr.mxu0 0.0
        %1247 = vmatpush1.msra.mxu0 %v238
        %1248 = vmatprep.subr.mxu0 0.0
        %1249 = vmatpush1.msra.mxu0 %v239
        %1250 = vmatprep.subr.mxu0 0.0
        %1251 = vmatpush1.msra.mxu0 %v240
        %1252 = vmatprep.subr.mxu0 0.0
        %1253 = vmatpush1.msra.mxu0 %v241
        %1254 = vmatprep.subr.mxu0 0.0
        %1255 = vmatpush1.msra.mxu0 %v242
        %1256 = vmatprep.subr.mxu0 0.0
        %1257 = vmatpush1.msra.mxu0 %v243
        %1258 = vmatprep.subr.mxu0 0.0
        %1259 = vmatpush1.msra.mxu0 %v244
        %1260 = vmatprep.subr.mxu0 0.0
        %1261 = vmatpush1.msra.mxu0 %v245
        %1262 = vmatprep.subr.mxu0 0.0
        %1263 = vmatpush1.msra.mxu0 %v246
        %1264 = vmatprep.subr.mxu0 0.0
        %1265 = vmatpush1.msra.mxu0 %v247
        %1266 = vmatprep.subr.mxu0 0.0
        %1267 = vmatpush1.msra.mxu0 0.0
        %1268 = vmatprep.subr.mxu0 0.0
        %1269 = vmatpush1.msra.mxu0 0.0
        %1270 = vmatprep.subr.mxu0 0.0
        %1271 = vmatpush1.msra.mxu0 0.0
        %1272 = vmatprep.subr.mxu0 0.0
        %1273 = vmatpush1.msra.mxu0 0.0
        %1274 = vmatprep.subr.mxu0 0.0
        %1275 = vmatpush1.msra.mxu0 0.0
        %1276 = vmatprep.subr.mxu0 0.0
        %1277 = vmatpush1.msra.mxu0 0.0
        %1278 = vmatprep.subr.mxu0 0.0
        %1279 = vmatpush1.msra.mxu0 0.0
        %1280 = vmatprep.subr.mxu0 0.0
        %1281 = vmatpush1.msra.mxu0 0.0
        %1282 = vmatprep.subr.mxu0 0.0
        %1283 = vmatpush1.msra.mxu0 0.0
        %1284 = vmatprep.subr.mxu0 0.0
        %1285 = vmatpush1.msra.mxu0 0.0
        %1286 = vmatprep.subr.mxu0 0.0
        %1287 = vmatpush1.msra.mxu0 0.0
        %1288 = vmatprep.subr.mxu0 0.0
        %1289 = vmatpush1.msra.mxu0 0.0
        %1290 = vmatprep.subr.mxu0 0.0
        %1291 = vmatpush1.msra.mxu0 0.0
        %1292 = vmatprep.subr.mxu0 0.0
        %1293 = vmatpush1.msra.mxu0 0.0
        %1294 = vmatprep.subr.mxu0 0.0
        %1295 = vmatpush1.msra.mxu0 0.0
        %1296 = vmatprep.subr.mxu0 0.0
        %1297 = vmatpush1.msra.mxu0 0.0
        %1298 = vmatprep.mubr.f32.mxu0 0.0
        %1299 = vmatmul.mubr.f32.gmra.mrb[0].mxu0 %v1230
        %v1300 = vpop.f32.mrb[0].mxu0
        %v1301 = vadd.f32 0.0, %v1300
        %v1302 = vpop.f32.mrb[0].mxu0
        %1303 = vdwg.mxu0
        %v1304 = vadd.f32 %v1233, %v1301
        %v1305 = vtanh.pop %v1304
        %1306 = vst [vmem:[%s1232] sm:$0xff] %v1305
        %s1307 = scalar_lea.vmem %s218, 88 [#allocation3]
        %v1308 = vld [vmem:[%s1307] sm:$0xff]
        %1309 = vmatprep.subr.mxu0 0.0
        %1310 = vmatpush1.msra.mxu0 %v232
        %1311 = vmatprep.subr.mxu0 0.0
        %1312 = vmatpush1.msra.mxu0 %v233
        %1313 = vmatprep.subr.mxu0 0.0
        %1314 = vmatpush1.msra.mxu0 %v234
        %1315 = vmatprep.subr.mxu0 0.0
        %1316 = vmatpush1.msra.mxu0 %v235
        %1317 = vmatprep.subr.mxu0 0.0
        %1318 = vmatpush1.msra.mxu0 %v236
        %1319 = vmatprep.subr.mxu0 0.0
        %1320 = vmatpush1.msra.mxu0 %v237
        %1321 = vmatprep.subr.mxu0 0.0
        %1322 = vmatpush1.msra.mxu0 %v238
        %1323 = vmatprep.subr.mxu0 0.0
        %1324 = vmatpush1.msra.mxu0 %v239
        %1325 = vmatprep.subr.mxu0 0.0
        %1326 = vmatpush1.msra.mxu0 %v240
        %1327 = vmatprep.subr.mxu0 0.0
        %1328 = vmatpush1.msra.mxu0 %v241
        %1329 = vmatprep.subr.mxu0 0.0
        %1330 = vmatpush1.msra.mxu0 %v242
        %1331 = vmatprep.subr.mxu0 0.0
        %1332 = vmatpush1.msra.mxu0 %v243
        %1333 = vmatprep.subr.mxu0 0.0
        %1334 = vmatpush1.msra.mxu0 %v244
        %1335 = vmatprep.subr.mxu0 0.0
        %1336 = vmatpush1.msra.mxu0 %v245
        %1337 = vmatprep.subr.mxu0 0.0
        %1338 = vmatpush1.msra.mxu0 %v246
        %1339 = vmatprep.subr.mxu0 0.0
        %1340 = vmatpush1.msra.mxu0 %v247
        %1341 = vmatprep.subr.mxu0 0.0
        %1342 = vmatpush1.msra.mxu0 0.0
        %1343 = vmatprep.subr.mxu0 0.0
        %1344 = vmatpush1.msra.mxu0 0.0
        %1345 = vmatprep.subr.mxu0 0.0
        %1346 = vmatpush1.msra.mxu0 0.0
        %1347 = vmatprep.subr.mxu0 0.0
        %1348 = vmatpush1.msra.mxu0 0.0
        %1349 = vmatprep.subr.mxu0 0.0
        %1350 = vmatpush1.msra.mxu0 0.0
        %1351 = vmatprep.subr.mxu0 0.0
        %1352 = vmatpush1.msra.mxu0 0.0
        %1353 = vmatprep.subr.mxu0 0.0
        %1354 = vmatpush1.msra.mxu0 0.0
        %1355 = vmatprep.subr.mxu0 0.0
        %1356 = vmatpush1.msra.mxu0 0.0
        %1357 = vmatprep.subr.mxu0 0.0
        %1358 = vmatpush1.msra.mxu0 0.0
        %1359 = vmatprep.subr.mxu0 0.0
        %1360 = vmatpush1.msra.mxu0 0.0
        %1361 = vmatprep.subr.mxu0 0.0
        %1362 = vmatpush1.msra.mxu0 0.0
        %1363 = vmatprep.subr.mxu0 0.0
        %1364 = vmatpush1.msra.mxu0 0.0
        %1365 = vmatprep.subr.mxu0 0.0
        %1366 = vmatpush1.msra.mxu0 0.0
        %1367 = vmatprep.subr.mxu0 0.0
        %1368 = vmatpush1.msra.mxu0 0.0
        %1369 = vmatprep.subr.mxu0 0.0
        %1370 = vmatpush1.msra.mxu0 0.0
        %1371 = vmatprep.subr.mxu0 0.0
        %1372 = vmatpush1.msra.mxu0 0.0
        %1373 = vmatprep.mubr.f32.mxu0 0.0
        %1374 = vmatmul.mubr.f32.gmra.mrb[0].mxu0 %v1305
        %v1375 = vpop.f32.mrb[0].mxu0
        %v1376 = vadd.f32 0.0, %v1375
        %v1377 = vpop.f32.mrb[0].mxu0
        %1378 = vdwg.mxu0
        %v1379 = vadd.f32 %v1308, %v1376
        %v1380 = vtanh.pop %v1379
        %1381 = vst [vmem:[%s1307] sm:$0xff] %v1380
        %s1382 = scalar_lea.vmem %s218, 96 [#allocation3]
        %v1383 = vld [vmem:[%s1382] sm:$0xff]
        %1384 = vmatprep.subr.mxu0 0.0
        %1385 = vmatpush1.msra.mxu0 %v232
        %1386 = vmatprep.subr.mxu0 0.0
        %1387 = vmatpush1.msra.mxu0 %v233
        %1388 = vmatprep.subr.mxu0 0.0
        %1389 = vmatpush1.msra.mxu0 %v234
        %1390 = vmatprep.subr.mxu0 0.0
        %1391 = vmatpush1.msra.mxu0 %v235
        %1392 = vmatprep.subr.mxu0 0.0
        %1393 = vmatpush1.msra.mxu0 %v236
        %1394 = vmatprep.subr.mxu0 0.0
        %1395 = vmatpush1.msra.mxu0 %v237
        %1396 = vmatprep.subr.mxu0 0.0
        %1397 = vmatpush1.msra.mxu0 %v238
        %1398 = vmatprep.subr.mxu0 0.0
        %1399 = vmatpush1.msra.mxu0 %v239
        %1400 = vmatprep.subr.mxu0 0.0
        %1401 = vmatpush1.msra.mxu0 %v240
        %1402 = vmatprep.subr.mxu0 0.0
        %1403 = vmatpush1.msra.mxu0 %v241
        %1404 = vmatprep.subr.mxu0 0.0
        %1405 = vmatpush1.msra.mxu0 %v242
        %1406 = vmatprep.subr.mxu0 0.0
        %1407 = vmatpush1.msra.mxu0 %v243
        %1408 = vmatprep.subr.mxu0 0.0
        %1409 = vmatpush1.msra.mxu0 %v244
        %1410 = vmatprep.subr.mxu0 0.0
        %1411 = vmatpush1.msra.mxu0 %v245
        %1412 = vmatprep.subr.mxu0 0.0
        %1413 = vmatpush1.msra.mxu0 %v246
        %1414 = vmatprep.subr.mxu0 0.0
        %1415 = vmatpush1.msra.mxu0 %v247
        %1416 = vmatprep.subr.mxu0 0.0
        %1417 = vmatpush1.msra.mxu0 0.0
        %1418 = vmatprep.subr.mxu0 0.0
        %1419 = vmatpush1.msra.mxu0 0.0
        %1420 = vmatprep.subr.mxu0 0.0
        %1421 = vmatpush1.msra.mxu0 0.0
        %1422 = vmatprep.subr.mxu0 0.0
        %1423 = vmatpush1.msra.mxu0 0.0
        %1424 = vmatprep.subr.mxu0 0.0
        %1425 = vmatpush1.msra.mxu0 0.0
        %1426 = vmatprep.subr.mxu0 0.0
        %1427 = vmatpush1.msra.mxu0 0.0
        %1428 = vmatprep.subr.mxu0 0.0
        %1429 = vmatpush1.msra.mxu0 0.0
        %1430 = vmatprep.subr.mxu0 0.0
        %1431 = vmatpush1.msra.mxu0 0.0
        %1432 = vmatprep.subr.mxu0 0.0
        %1433 = vmatpush1.msra.mxu0 0.0
        %1434 = vmatprep.subr.mxu0 0.0
        %1435 = vmatpush1.msra.mxu0 0.0
        %1436 = vmatprep.subr.mxu0 0.0
        %1437 = vmatpush1.msra.mxu0 0.0
        %1438 = vmatprep.subr.mxu0 0.0
        %1439 = vmatpush1.msra.mxu0 0.0
        %1440 = vmatprep.subr.mxu0 0.0
        %1441 = vmatpush1.msra.mxu0 0.0
        %1442 = vmatprep.subr.mxu0 0.0
        %1443 = vmatpush1.msra.mxu0 0.0
        %1444 = vmatprep.subr.mxu0 0.0
        %1445 = vmatpush1.msra.mxu0 0.0
        %1446 = vmatprep.subr.mxu0 0.0
        %1447 = vmatpush1.msra.mxu0 0.0
        %1448 = vmatprep.mubr.f32.mxu0 0.0
        %1449 = vmatmul.mubr.f32.gmra.mrb[0].mxu0 %v1380
        %v1450 = vpop.f32.mrb[0].mxu0
        %v1451 = vadd.f32 0.0, %v1450
        %v1452 = vpop.f32.mrb[0].mxu0
        %1453 = vdwg.mxu0
        %v1454 = vadd.f32 %v1383, %v1451
        %v1455 = vtanh.pop %v1454
        %1456 = vst [vmem:[%s1382] sm:$0xff] %v1455
        %s1457 = scalar_lea.vmem %s218, 104 [#allocation3]
        %v1458 = vld [vmem:[%s1457] sm:$0xff]
        %1459 = vmatprep.subr.mxu0 0.0
        %1460 = vmatpush1.msra.mxu0 %v232
        %1461 = vmatprep.subr.mxu0 0.0
        %1462 = vmatpush1.msra.mxu0 %v233
        %1463 = vmatprep.subr.mxu0 0.0
        %1464 = vmatpush1.msra.mxu0 %v234
        %1465 = vmatprep.subr.mxu0 0.0
        %1466 = vmatpush1.msra.mxu0 %v235
        %1467 = vmatprep.subr.mxu0 0.0
        %1468 = vmatpush1.msra.mxu0 %v236
        %1469 = vmatprep.subr.mxu0 0.0
        %1470 = vmatpush1.msra.mxu0 %v237
        %1471 = vmatprep.subr.mxu0 0.0
        %1472 = vmatpush1.msra.mxu0 %v238
        %1473 = vmatprep.subr.mxu0 0.0
        %1474 = vmatpush1.msra.mxu0 %v239
        %1475 = vmatprep.subr.mxu0 0.0
        %1476 = vmatpush1.msra.mxu0 %v240
        %1477 = vmatprep.subr.mxu0 0.0
        %1478 = vmatpush1.msra.mxu0 %v241
        %1479 = vmatprep.subr.mxu0 0.0
        %1480 = vmatpush1.msra.mxu0 %v242
        %1481 = vmatprep.subr.mxu0 0.0
        %1482 = vmatpush1.msra.mxu0 %v243
        %1483 = vmatprep.subr.mxu0 0.0
        %1484 = vmatpush1.msra.mxu0 %v244
        %1485 = vmatprep.subr.mxu0 0.0
        %1486 = vmatpush1.msra.mxu0 %v245
        %1487 = vmatprep.subr.mxu0 0.0
        %1488 = vmatpush1.msra.mxu0 %v246
        %1489 = vmatprep.subr.mxu0 0.0
        %1490 = vmatpush1.msra.mxu0 %v247
        %1491 = vmatprep.subr.mxu0 0.0
        %1492 = vmatpush1.msra.mxu0 0.0
        %1493 = vmatprep.subr.mxu0 0.0
        %1494 = vmatpush1.msra.mxu0 0.0
        %1495 = vmatprep.subr.mxu0 0.0
        %1496 = vmatpush1.msra.mxu0 0.0
        %1497 = vmatprep.subr.mxu0 0.0
        %1498 = vmatpush1.msra.mxu0 0.0
        %1499 = vmatprep.subr.mxu0 0.0
        %1500 = vmatpush1.msra.mxu0 0.0
        %1501 = vmatprep.subr.mxu0 0.0
        %1502 = vmatpush1.msra.mxu0 0.0
        %1503 = vmatprep.subr.mxu0 0.0
        %1504 = vmatpush1.msra.mxu0 0.0
        %1505 = vmatprep.subr.mxu0 0.0
        %1506 = vmatpush1.msra.mxu0 0.0
        %1507 = vmatprep.subr.mxu0 0.0
        %1508 = vmatpush1.msra.mxu0 0.0
        %1509 = vmatprep.subr.mxu0 0.0
        %1510 = vmatpush1.msra.mxu0 0.0
        %1511 = vmatprep.subr.mxu0 0.0
        %1512 = vmatpush1.msra.mxu0 0.0
        %1513 = vmatprep.subr.mxu0 0.0
        %1514 = vmatpush1.msra.mxu0 0.0
        %1515 = vmatprep.subr.mxu0 0.0
        %1516 = vmatpush1.msra.mxu0 0.0
        %1517 = vmatprep.subr.mxu0 0.0
        %1518 = vmatpush1.msra.mxu0 0.0
        %1519 = vmatprep.subr.mxu0 0.0
        %1520 = vmatpush1.msra.mxu0 0.0
        %1521 = vmatprep.subr.mxu0 0.0
        %1522 = vmatpush1.msra.mxu0 0.0
        %1523 = vmatprep.mubr.f32.mxu0 0.0
        %1524 = vmatmul.mubr.f32.gmra.mrb[0].mxu0 %v1455
        %v1525 = vpop.f32.mrb[0].mxu0
        %v1526 = vadd.f32 0.0, %v1525
        %v1527 = vpop.f32.mrb[0].mxu0
        %1528 = vdwg.mxu0
        %v1529 = vadd.f32 %v1458, %v1526
        %v1530 = vtanh.pop %v1529
        %1531 = vst [vmem:[%s1457] sm:$0xff] %v1530
        %s1532 = scalar_lea.vmem %s218, 112 [#allocation3]
        %v1533 = vld [vmem:[%s1532] sm:$0xff]
        %1534 = vmatprep.subr.mxu0 0.0
        %1535 = vmatpush1.msra.mxu0 %v232
        %1536 = vmatprep.subr.mxu0 0.0
        %1537 = vmatpush1.msra.mxu0 %v233
        %1538 = vmatprep.subr.mxu0 0.0
        %1539 = vmatpush1.msra.mxu0 %v234
        %1540 = vmatprep.subr.mxu0 0.0
        %1541 = vmatpush1.msra.mxu0 %v235
        %1542 = vmatprep.subr.mxu0 0.0
        %1543 = vmatpush1.msra.mxu0 %v236
        %1544 = vmatprep.subr.mxu0 0.0
        %1545 = vmatpush1.msra.mxu0 %v237
        %1546 = vmatprep.subr.mxu0 0.0
        %1547 = vmatpush1.msra.mxu0 %v238
        %1548 = vmatprep.subr.mxu0 0.0
        %1549 = vmatpush1.msra.mxu0 %v239
        %1550 = vmatprep.subr.mxu0 0.0
        %1551 = vmatpush1.msra.mxu0 %v240
        %1552 = vmatprep.subr.mxu0 0.0
        %1553 = vmatpush1.msra.mxu0 %v241
        %1554 = vmatprep.subr.mxu0 0.0
        %1555 = vmatpush1.msra.mxu0 %v242
        %1556 = vmatprep.subr.mxu0 0.0
        %1557 = vmatpush1.msra.mxu0 %v243
        %1558 = vmatprep.subr.mxu0 0.0
        %1559 = vmatpush1.msra.mxu0 %v244
        %1560 = vmatprep.subr.mxu0 0.0
        %1561 = vmatpush1.msra.mxu0 %v245
        %1562 = vmatprep.subr.mxu0 0.0
        %1563 = vmatpush1.msra.mxu0 %v246
        %1564 = vmatprep.subr.mxu0 0.0
        %1565 = vmatpush1.msra.mxu0 %v247
        %1566 = vmatprep.subr.mxu0 0.0
        %1567 = vmatpush1.msra.mxu0 0.0
        %1568 = vmatprep.subr.mxu0 0.0
        %1569 = vmatpush1.msra.mxu0 0.0
        %1570 = vmatprep.subr.mxu0 0.0
        %1571 = vmatpush1.msra.mxu0 0.0
        %1572 = vmatprep.subr.mxu0 0.0
        %1573 = vmatpush1.msra.mxu0 0.0
        %1574 = vmatprep.subr.mxu0 0.0
        %1575 = vmatpush1.msra.mxu0 0.0
        %1576 = vmatprep.subr.mxu0 0.0
        %1577 = vmatpush1.msra.mxu0 0.0
        %1578 = vmatprep.subr.mxu0 0.0
        %1579 = vmatpush1.msra.mxu0 0.0
        %1580 = vmatprep.subr.mxu0 0.0
        %1581 = vmatpush1.msra.mxu0 0.0
        %1582 = vmatprep.subr.mxu0 0.0
        %1583 = vmatpush1.msra.mxu0 0.0
        %1584 = vmatprep.subr.mxu0 0.0
        %1585 = vmatpush1.msra.mxu0 0.0
        %1586 = vmatprep.subr.mxu0 0.0
        %1587 = vmatpush1.msra.mxu0 0.0
        %1588 = vmatprep.subr.mxu0 0.0
        %1589 = vmatpush1.msra.mxu0 0.0
        %1590 = vmatprep.subr.mxu0 0.0
        %1591 = vmatpush1.msra.mxu0 0.0
        %1592 = vmatprep.subr.mxu0 0.0
        %1593 = vmatpush1.msra.mxu0 0.0
        %1594 = vmatprep.subr.mxu0 0.0
        %1595 = vmatpush1.msra.mxu0 0.0
        %1596 = vmatprep.subr.mxu0 0.0
        %1597 = vmatpush1.msra.mxu0 0.0
        %1598 = vmatprep.mubr.f32.mxu0 0.0
        %1599 = vmatmul.mubr.f32.gmra.mrb[0].mxu0 %v1530
        %v1600 = vpop.f32.mrb[0].mxu0
        %v1601 = vadd.f32 0.0, %v1600
        %v1602 = vpop.f32.mrb[0].mxu0
        %1603 = vdwg.mxu0
        %v1604 = vadd.f32 %v1533, %v1601
        %v1605 = vtanh.pop %v1604
        %1606 = vst [vmem:[%s1532] sm:$0xff] %v1605
        %s1607 = scalar_lea.vmem %s218, 120 [#allocation3]
        %v1608 = vld [vmem:[%s1607] sm:$0xff]
        %1609 = vmatprep.subr.mxu0 0.0
        %1610 = vmatpush1.msra.mxu0 %v232
        %1611 = vmatprep.subr.mxu0 0.0
        %1612 = vmatpush1.msra.mxu0 %v233
        %1613 = vmatprep.subr.mxu0 0.0
        %1614 = vmatpush1.msra.mxu0 %v234
        %1615 = vmatprep.subr.mxu0 0.0
        %1616 = vmatpush1.msra.mxu0 %v235
        %1617 = vmatprep.subr.mxu0 0.0
        %1618 = vmatpush1.msra.mxu0 %v236
        %1619 = vmatprep.subr.mxu0 0.0
        %1620 = vmatpush1.msra.mxu0 %v237
        %1621 = vmatprep.subr.mxu0 0.0
        %1622 = vmatpush1.msra.mxu0 %v238
        %1623 = vmatprep.subr.mxu0 0.0
        %1624 = vmatpush1.msra.mxu0 %v239
        %1625 = vmatprep.subr.mxu0 0.0
        %1626 = vmatpush1.msra.mxu0 %v240
        %1627 = vmatprep.subr.mxu0 0.0
        %1628 = vmatpush1.msra.mxu0 %v241
        %1629 = vmatprep.subr.mxu0 0.0
        %1630 = vmatpush1.msra.mxu0 %v242
        %1631 = vmatprep.subr.mxu0 0.0
        %1632 = vmatpush1.msra.mxu0 %v243
        %1633 = vmatprep.subr.mxu0 0.0
        %1634 = vmatpush1.msra.mxu0 %v244
        %1635 = vmatprep.subr.mxu0 0.0
        %1636 = vmatpush1.msra.mxu0 %v245
        %1637 = vmatprep.subr.mxu0 0.0
        %1638 = vmatpush1.msra.mxu0 %v246
        %1639 = vmatprep.subr.mxu0 0.0
        %1640 = vmatpush1.msra.mxu0 %v247
        %1641 = vmatprep.subr.mxu0 0.0
        %1642 = vmatpush1.msra.mxu0 0.0
        %1643 = vmatprep.subr.mxu0 0.0
        %1644 = vmatpush1.msra.mxu0 0.0
        %1645 = vmatprep.subr.mxu0 0.0
        %1646 = vmatpush1.msra.mxu0 0.0
        %1647 = vmatprep.subr.mxu0 0.0
        %1648 = vmatpush1.msra.mxu0 0.0
        %1649 = vmatprep.subr.mxu0 0.0
        %1650 = vmatpush1.msra.mxu0 0.0
        %1651 = vmatprep.subr.mxu0 0.0
        %1652 = vmatpush1.msra.mxu0 0.0
        %1653 = vmatprep.subr.mxu0 0.0
        %1654 = vmatpush1.msra.mxu0 0.0
        %1655 = vmatprep.subr.mxu0 0.0
        %1656 = vmatpush1.msra.mxu0 0.0
        %1657 = vmatprep.subr.mxu0 0.0
        %1658 = vmatpush1.msra.mxu0 0.0
        %1659 = vmatprep.subr.mxu0 0.0
        %1660 = vmatpush1.msra.mxu0 0.0
        %1661 = vmatprep.subr.mxu0 0.0
        %1662 = vmatpush1.msra.mxu0 0.0
        %1663 = vmatprep.subr.mxu0 0.0
        %1664 = vmatpush1.msra.mxu0 0.0
        %1665 = vmatprep.subr.mxu0 0.0
        %1666 = vmatpush1.msra.mxu0 0.0
        %1667 = vmatprep.subr.mxu0 0.0
        %1668 = vmatpush1.msra.mxu0 0.0
        %1669 = vmatprep.subr.mxu0 0.0
        %1670 = vmatpush1.msra.mxu0 0.0
        %1671 = vmatprep.subr.mxu0 0.0
        %1672 = vmatpush1.msra.mxu0 0.0
        %1673 = vmatprep.mubr.f32.mxu0 0.0
        %1674 = vmatmul.mubr.f32.gmra.mrb[0].mxu0 %v1605
        %v1675 = vpop.f32.mrb[0].mxu0
        %v1676 = vadd.f32 0.0, %v1675
        %v1677 = vpop.f32.mrb[0].mxu0
        %1678 = vdwg.mxu0
        %v1679 = vadd.f32 %v1608, %v1676
        %v1680 = vtanh.pop %v1679
        %1681 = vst [vmem:[%s1607] sm:$0xff] %v1680
        %1682 = vst [vmem:[#allocation2] sm:$0xff] %v1680
        %s1683 = sand.u32 %s137, 1
        %s1684 = scalar_lea.sflag [#allocation4], %s1683
        %s1685 = sand.u32 %s137, 1
        %s1686 = smul.addr %s1685, 128
        %s1687 = scalar_lea.vmem [#allocation3], %s1686
        // Predicated region
        $region45: #{tpu_custom_call.1} parent=39 // pred_check
          %p1688 = pneg %p147
        $region46: #{tpu_custom_call.1} parent=39 // pred_check_branch
          %1690 = sbr.rel (%p1688) target = $region48
        $region47: #{tpu_custom_call.1} parent=39 // pred_region
          %s1691 = smul.u32 16, %s19
          %s1693 = ssub.s32 2048, 2048
          %1694 = vsyncadd %s1684, %s1693
          %s1695 = smul.addr %s1691, 128
          %s1696 = scalar_lea.hbm %s5, %s1695
          %s1697 = sshll.u32 %s1687, 4
          %s1698 = int_to_ptr.vmem [resolvable:$true] %s1697
          %1703 = dma.vmem_to_hbm [thread:$0]  %s1698, 2048, %s1696, %s1684, 128, 128, 8
        $region48: #{tpu_custom_call.1} parent=39 // pred_fallthru
          _
      $region40: #{tpu_custom_call.1} parent=5 // pred_fallthru
        _
      %p1704 = scmp.le.s32.totalorder 2, %s14
      // Predicated region
      $region49: #{tpu_custom_call.1} parent=5 // pred_check
        %p1705 = pneg %p1704
      $region50: #{tpu_custom_call.1} parent=5 // pred_check_branch
        %1707 = sbr.rel (%p1705) target = $region52
      $region51: #{tpu_custom_call.1} parent=5 // pred_region
        %s1708 = ssub.s32 %s14, 2
        // Predicated region
        $region53: #{tpu_custom_call.1} parent=51 // pred_check
          %p1709 = pneg %p153
        $region54: #{tpu_custom_call.1} parent=51 // pred_check_branch
          %1711 = sbr.rel (%p1709) target = $region56
        $region55: #{tpu_custom_call.1} parent=51 // pred_region
          %s1712 = sand.u32 %s138, 1
          %s1713 = scalar_lea.sflag [#allocation4], %s1712
          %s1714 = sand.u32 %s138, 1
          %s1715 = smul.addr %s1714, 128
          %s1716 = scalar_lea.vmem [#allocation3], %s1715
          %1717 = dma.done %s1713, 2048
        $region56: #{tpu_custom_call.1} parent=51 // pred_fallthru
          _
      $region52: #{tpu_custom_call.1} parent=5 // pred_fallthru
        _
    $region6: #{tpu_custom_call.1} parent=1 // loop_footer
      %s18 = sadd.s32 1, %s14
    $region7: #{tpu_custom_call.1} parent=1 // loop_footer_branch
      %13 = sbr.rel target = $region3
    $region8: #{tpu_custom_call.1} parent=1 // loop_exit
      _
    %1718 = vsyncpa [#allocation4], 1
    %s1719 = scalar_lea.sflag [#allocation4], 1
    %1720 = vsyncpa %s1719, 1

</llo_original>
